<compile_context>
chip_gen: v7x
topology: tpu7x:2x2x1
jax: 0.10.0
libtpu: 0.0.40
codegen_flags: <defaults>
</compile_context>

<pallas_src>
import functools

import jax
import jax.numpy as jnp
from jax.experimental import pallas as pl
from jax.experimental.pallas import tpu as pltpu

F32 = jnp.float32
BF16 = jnp.bfloat16

PIXEL_MEAN = jnp.array([0.485, 0.456, 0.406], F32)
PIXEL_STD = jnp.array([0.229, 0.224, 0.225], F32)

_VMEM_LIMIT = 32 * 1024 * 1024        # explicit scoped-VMEM limit (safe on v5e/v6e/v7x)


def _round_up(x, m):
    return (x + m - 1) // m * m


def _pick_tile(dim, base, cap):
    """(tile, padded_dim): tile % base == 0, tile <= cap, tile divides padded_dim."""
    p = _round_up(dim, base)
    if p <= cap:
        return p, p
    return cap, _round_up(dim, cap)


def _vmem_budget():
    """Per-step VMEM budget derived from the chip (v7x has only 64 MiB physical)."""
    try:
        cap = pltpu.get_tpu_info().vmem_capacity_bytes
    except Exception:                                   # conservative fallback
        cap = 64 * 1024 * 1024
    return min(24 * 1024 * 1024, cap // 4)


def _plan_tiles(G, M, K, N, out_bytes, needs_acc):
    budget = _vmem_budget()
    tm, Mp = _pick_tile(M, 16, 512)                     # 16: bf16 sublane-pack friendly
    tk, Kp = _pick_tile(K, 128, 512)
    tn, Np = _pick_tile(N, 128, 2048)                   # lane-dense output stores

    def fp(tm_, tk_, tn_):
        a_b = 2 * tm_ * tk_ * 2                         # bf16, double-buffered
        b_b = 2 * tk_ * tn_ * 2
        o_b = 2 * tm_ * tn_ * out_bytes
        acc = tm_ * tn_ * 4 if needs_acc else 0
        return a_b + b_b + o_b + acc + 2 * tm_ * 4

    while fp(tm, tk, tn) > budget and tn > 128:
        tn, Np = _pick_tile(N, 128, max(128, (tn // 2) // 128 * 128))
    while fp(tm, tk, tn) > budget and tm > 16:
        tm, Mp = _pick_tile(M, 16, max(16, (tm // 2) // 16 * 16))
    while fp(tm, tk, tn) > budget and tk > 128:
        tk, Kp = _pick_tile(K, 128, max(128, (tk // 2) // 128 * 128))

    # v7x has 2 TensorCores: ensure >=2 blocks along a parallel grid axis.
    if G * (Mp // tm) * (Np // tn) < 2:
        if tn > 128:
            tn, Np = _pick_tile(N, 128, max(128, (tn // 2) // 128 * 128))
        elif tm > 16:
            tm, Mp = _pick_tile(M, 16, max(16, (tm // 2) // 16 * 16))
    return tm, Mp, tk, Kp, tn, Np


# ----------------------------------------------------------------------------
# Batched Pallas matmul kernel: out[g] = act(a[g] @ pre_act(b[g]) + bias)
# a: (G, M, K) weights (bf16), b: (G, K, N) im2col data (bf16), bias: (M,) f32.
# ----------------------------------------------------------------------------
def _apply_pre_act(b, pre_act):
    if pre_act == "leaky_relu":
        # LeakyReLU(0.2) directly in bf16 (bf16 VALU on v6e/v7x; Mosaic handles v5e)
        return jnp.where(b >= 0, b, 0.2 * b).astype(b.dtype)
    if pre_act == "relu":
        return jnp.maximum(b, 0).astype(b.dtype)
    return b


def _bmm_kernel_f32out(a_ref, b_ref, bias_ref, o_ref, *, pre_act, post_act):
    # f32 output: the output block is resident across the K axis -> accumulate
    # directly into o_ref (no VMEM scratch, no copy epilogue).
    k = pl.program_id(3)

    @pl.when(k == 0)
    def _():
        # bias folded into the accumulator init (no epilogue add, no refetch)
        o_ref[...] = jnp.broadcast_to(bias_ref[...], o_ref.shape)

    b = _apply_pre_act(b_ref[...], pre_act)
    o_ref[...] += jnp.dot(a_ref[...], b, preferred_element_type=jnp.float32)

    if post_act == "tanh":
        @pl.when(k == pl.num_programs(3) - 1)
        def _():
            o_ref[...] = jnp.tanh(o_ref[...])


def _bmm_kernel_bf16out(a_ref, b_ref, bias_ref, o_ref, acc_ref, *, pre_act, post_act):
    # bf16 output: keep the f32 accumulator scratch, cast once at the last K step.
    k = pl.program_id(3)

    @pl.when(k == 0)
    def _():
        acc_ref[...] = jnp.broadcast_to(bias_ref[...], acc_ref.shape)

    b = _apply_pre_act(b_ref[...], pre_act)
    acc_ref[...] += jnp.dot(a_ref[...], b, preferred_element_type=jnp.float32)

    @pl.when(k == pl.num_programs(3) - 1)
    def _():
        r = acc_ref[...]
        if post_act == "tanh":
            r = jnp.tanh(r)
        o_ref[...] = r.astype(o_ref.dtype)


@functools.partial(jax.jit, static_argnames=("pre_act", "post_act", "out_dtype"))
def _pallas_bmm(a, b, bias, *, pre_act="none", post_act="none", out_dtype=F32):
    G, M, K = a.shape
    N = b.shape[-1]
    needs_acc = (out_dtype != F32)
    out_bytes = jnp.dtype(out_dtype).itemsize
    tm, Mp, tk, Kp, tn, Np = _plan_tiles(G, M, K, N, out_bytes, needs_acc)

    a = a.astype(BF16)
    b = b.astype(BF16)
    if (Mp, Kp) != (M, K):
        a = jnp.pad(a, ((0, 0), (0, Mp - M), (0, Kp - K)))
    if (Kp, Np) != (K, N):
        b = jnp.pad(b, ((0, 0), (0, Kp - K), (0, Np - N)))
    bias_p = bias.astype(F32)
    if Mp != M:
        bias_p = jnp.pad(bias_p, (0, Mp - M))
    bias_p = bias_p.reshape(Mp, 1)

    grid = (G, Mp // tm, Np // tn, Kp // tk)
    in_specs = [
        pl.BlockSpec((None, tm, tk), lambda g, i, j, k: (g, i, k)),
        pl.BlockSpec((None, tk, tn), lambda g, i, j, k: (g, k, j)),
        pl.BlockSpec((tm, 1), lambda g, i, j, k: (i, 0)),
    ]
    out_spec = pl.BlockSpec((None, tm, tn), lambda g, i, j, k: (g, i, j))

    if needs_acc:
        kernel = functools.partial(_bmm_kernel_bf16out, pre_act=pre_act, post_act=post_act)
        scratch = [pltpu.VMEM((tm, tn), jnp.float32)]
    else:
        kernel = functools.partial(_bmm_kernel_f32out, pre_act=pre_act, post_act=post_act)
        scratch = []

    out = pl.pallas_call(
        kernel,
        out_shape=jax.ShapeDtypeStruct((G, Mp, Np), out_dtype),
        grid_spec=pltpu.PrefetchScalarGridSpec(
            num_scalar_prefetch=0,
            grid=grid,
            in_specs=in_specs,
            out_specs=out_spec,
            scratch_shapes=scratch,
        ),
        compiler_params=pltpu.CompilerParams(
            dimension_semantics=("parallel", "parallel", "parallel", "arbitrary"),
            vmem_limit_bytes=_VMEM_LIMIT,
        ),
    )(a, b, bias_p)
    if (Mp, Np) != (M, N):
        out = out[:, :M, :N]
    return out


def _conv_bmm(a, b, bias, pre_act, post_act, out_bf16):
    """Dispatch conv-as-matmul: Pallas for real work, XLA for tiny bottleneck layers."""
    G, M, K = a.shape
    N = b.shape[-1]
    out_dtype = BF16 if out_bf16 else F32
    if N >= 128 and G * M * K * N >= (1 << 18):
        return _pallas_bmm(a, b, bias, pre_act=pre_act, post_act=post_act,
                           out_dtype=out_dtype)
    # Tiny layers (bottleneck H*W<=4, etc.): Pallas launch overhead + MXU-tile
    # padding dominate, so route through plain XLA (per perf review).
    af = a.astype(F32)
    bf = b.astype(F32)
    if pre_act == "leaky_relu":
        bf = jnp.where(bf >= 0, bf, 0.2 * bf)
    elif pre_act == "relu":
        bf = jnp.maximum(bf, 0.0)
    out = jnp.einsum("gmk,gkn->gmn", af, bf,
                     preferred_element_type=jnp.float32) + bias.astype(F32)[None, :, None]
    if post_act == "tanh":
        out = jnp.tanh(out)
    return out.astype(out_dtype)


# ----------------------------------------------------------------------------
# InstanceNorm2d(affine=False)  — channel-major (C, B, H, W), bf16 in/out
# ----------------------------------------------------------------------------
def _in_kernel(x_ref, o_ref):
    x = x_ref[...].astype(jnp.float32)
    mean = jnp.mean(x, axis=-1, keepdims=True)
    var = jnp.mean((x - mean) * (x - mean), axis=-1, keepdims=True)
    o_ref[...] = ((x - mean) * jax.lax.rsqrt(var + 1e-5)).astype(o_ref.dtype)


@jax.jit
def instance_norm2d_cm(x):
    C, B, H, W = x.shape
    R, L = C * B, H * W
    if L < 128 or R < 8:
        # lane width < 128 -> masked partial stores dominate; tiny anyway -> XLA
        xf = x.astype(F32)
        mean = jnp.mean(xf, axis=(2, 3), keepdims=True)
        var = jnp.mean((xf - mean) ** 2, axis=(2, 3), keepdims=True)
        return ((xf - mean) * jax.lax.rsqrt(var + 1e-5)).astype(x.dtype)

    x2 = x.reshape(R, L).astype(BF16)
    Rp = _round_up(R, 16)
    if Rp != R:
        x2 = jnp.pad(x2, ((0, Rp - R), (0, 0)))

    blk_budget = max(_vmem_budget() // 6, 1 << 20)      # bigger blocks on v6e/v7x
    rb = 16
    for cand in (1024, 512, 256, 128, 64, 32, 16):
        if cand <= Rp and Rp % cand == 0 and cand * L * 2 <= blk_budget:
            rb = cand
            break

    y = pl.pallas_call(
        _in_kernel,
        out_shape=jax.ShapeDtypeStruct((Rp, L), BF16),
        grid_spec=pltpu.PrefetchScalarGridSpec(
            num_scalar_prefetch=0,
            grid=(Rp // rb,),
            in_specs=[pl.BlockSpec((rb, L), lambda i: (i, 0))],
            out_specs=pl.BlockSpec((rb, L), lambda i: (i, 0)),
        ),
        compiler_params=pltpu.CompilerParams(
            dimension_semantics=("parallel",),
            vmem_limit_bytes=_VMEM_LIMIT),
    )(x2)
    if Rp != R:
        y = y[:R]
    return y.reshape(C, B, H, W).astype(x.dtype)


# ----------------------------------------------------------------------------
# Conv2d (k=4, s=2, p=1) and ConvTranspose2d (k=4, s=2, p=1), channel-major
# ----------------------------------------------------------------------------
@functools.partial(jax.jit, static_argnames=("pre_act", "post_act", "out_bf16"))
def conv2d_s2_cm(x, w, b, pre_act="none", post_act="none", out_bf16=True):
    # x: (Cin, B, H, W), w: (Cout, Cin, 4, 4), b: (Cout,)
    Cin, B, H, W = x.shape
    Cout = w.shape[0]
    Ho, Wo = H // 2, W // 2
    xp = jnp.pad(x, ((0, 0), (0, 0), (1, 1), (1, 1))).astype(BF16)
    cols = []
    for kh in range(4):
        for kw in range(4):
            cols.append(xp[:, :, kh:kh + 2 * Ho:2, kw:kw + 2 * Wo:2])
    col = jnp.stack(cols, axis=1).reshape(Cin * 16, B * Ho * Wo)   # (Cin*16, B*Ho*Wo)
    a = w.reshape(Cout, Cin * 16)
    out = _conv_bmm(a[None], col[None], b, pre_act, post_act, out_bf16)[0]
    return out.reshape(Cout, B, Ho, Wo)                             # stays channel-major


@functools.partial(jax.jit, static_argnames=("pre_act", "post_act", "out_bf16"))
def conv_transpose2d_s2_cm(x, w, b, pre_act="none", post_act="none", out_bf16=True):
    # x: (Cin, B, H, W), w: (Cin, Cout, 4, 4) (PyTorch ConvTranspose2d layout)
    # 4-phase (output-parity) decomposition: each output parity (py,px) receives
    # only 2x2 of the 4x4 taps -> 4x fewer MACs than a dilated-input im2col.
    Cin, B, H, W = x.shape
    Cout = w.shape[1]
    xp = jnp.pad(x, ((0, 0), (0, 0), (1, 1), (1, 1))).astype(BF16)

    a_phases, col_phases = [], []
    for py in (0, 1):
        khs = (1, 3) if py == 0 else (0, 2)
        for px in (0, 1):
            kws = (1, 3) if px == 0 else (0, 2)
            taps_w, taps_c = [], []
            for kh in khs:
                dy = (py + 1 - kh) // 2
                for kw in kws:
                    dx = (px + 1 - kw) // 2
                    taps_w.append(w[:, :, kh, kw])                            # (Cin, Cout)
                    taps_c.append(xp[:, :, 1 + dy:1 + dy + H, 1 + dx:1 + dx + W])
            aw = jnp.stack(taps_w, axis=-1)                                   # (Cin, Cout, 4)
            a_phases.append(aw.transpose(1, 0, 2).reshape(Cout, Cin * 4))
            cc = jnp.stack(taps_c, axis=1)                                    # (Cin, 4, B, H, W)
            col_phases.append(cc.reshape(Cin * 4, B * H * W))

    a4 = jnp.stack(a_phases, axis=0)           # (4, Cout, Cin*4)
    c4 = jnp.stack(col_phases, axis=0)         # (4, Cin*4, B*H*W)
    out = _conv_bmm(a4, c4, b, pre_act, post_act, out_bf16)        # (4, Cout, B*H*W)
    # TODO(synk): fold this phase de-interleave into the consumer (next im2col /
    # IN) instead of an HBM shuffle; it is at least done in bf16 now.
    out = out.reshape(2, 2, Cout, B, H, W).transpose(2, 3, 4, 0, 5, 1)
    return out.reshape(Cout, B, 2 * H, 2 * W)


# ----------------------------------------------------------------------------
# UnetGenerator (InstanceNorm norm_layer, use_bias=True), channel-major internal
# ----------------------------------------------------------------------------
def _build_block(key, outer_nc, inner_nc, input_nc=None, sub=None,
                 outermost=False, innermost=False):
    if input_nc is None:
        input_nc = outer_nc
    k1, k2 = jax.random.split(key)
    dw = jax.random.normal(k1, (inner_nc, input_nc, 4, 4), F32) * \
        (2.0 / (input_nc * 16)) ** 0.5
    db = jnp.zeros((inner_nc,), F32)
    up_in = inner_nc if innermost else inner_nc * 2
    uw = jax.random.normal(k2, (up_in, outer_nc, 4, 4), F32) * \
        (2.0 / (up_in * 16)) ** 0.5
    ub = jnp.zeros((outer_nc,), F32)
    return dict(downconv=(dw, db), upconv=(uw, ub),
                outermost=outermost, innermost=innermost, sub=sub)


def build_unet_params(key, input_nc=3, output_nc=1, num_downs=8, ngf=64):
    keys = jax.random.split(key, num_downs)
    blk = _build_block(keys[0], ngf * 8, ngf * 8, innermost=True)
    ki = 1
    for _ in range(num_downs - 5):
        blk = _build_block(keys[ki], ngf * 8, ngf * 8, sub=blk)
        ki += 1
    blk = _build_block(keys[ki], ngf * 4, ngf * 8, sub=blk); ki += 1
    blk = _build_block(keys[ki], ngf * 2, ngf * 4, sub=blk); ki += 1
    blk = _build_block(keys[ki], ngf, ngf * 2, sub=blk); ki += 1
    blk = _build_block(keys[ki], output_nc, ngf, input_nc=input_nc,
                       sub=blk, outermost=True)
    return blk


def unet_forward(p, x):
    # x: (C, B, H, W) channel-major (matmul-native); internal activations bf16.
    dw, db = p['downconv']
    uw, ub = p['upconv']
    if p['outermost']:
        h = conv2d_s2_cm(x, dw, db, pre_act="none", out_bf16=True)
        h = unet_forward(p['sub'], h)
        return conv_transpose2d_s2_cm(h, uw, ub, pre_act="relu", post_act="tanh",
                                      out_bf16=False)
    elif p['innermost']:
        h = conv2d_s2_cm(x, dw, db, pre_act="leaky_relu", out_bf16=True)
        y = conv_transpose2d_s2_cm(h, uw, ub, pre_act="relu", out_bf16=True)
        y = instance_norm2d_cm(y)
        return jnp.concatenate([x, y], axis=0)
    else:
        h = conv2d_s2_cm(x, dw, db, pre_act="leaky_relu", out_bf16=True)
        h = instance_norm2d_cm(h)
        h = unet_forward(p['sub'], h)
        y = conv_transpose2d_s2_cm(h, uw, ub, pre_act="relu", out_bf16=True)
        y = instance_norm2d_cm(y)
        return jnp.concatenate([x, y], axis=0)


# ----------------------------------------------------------------------------
# Tiny tail ops — plain XLA per perf review (launch overhead / padding waste)
# ----------------------------------------------------------------------------
@jax.jit
def batchnorm1d_train(x, w, b):
    # BatchNorm1d training-mode (batch statistics; running stats not updated).
    mean = jnp.mean(x, axis=0, keepdims=True)
    var = jnp.mean((x - mean) ** 2, axis=0, keepdims=True)
    return (x - mean) * jax.lax.rsqrt(var + 1e-5) * w + b


@jax.jit
def linear_no_bias(x, w):
    # x: (B, K), w: (num_classes, K).  Uses Pallas only when it is actually big.
    Bq, K = x.shape
    C = w.shape[0]
    if C >= 128 and Bq * K * C >= (1 << 18):
        return _pallas_bmm(x[None], w.T[None], jnp.zeros((Bq,), F32))[0]
    return x @ w.T


# ----------------------------------------------------------------------------
# build_transformer.forward (training branch)
# ----------------------------------------------------------------------------
def build_transformer_forward(params, sx, x, global_feat, reconloss):
    sx_cm = jnp.transpose(sx, (1, 0, 2, 3))              # single layout change NCHW->CNHW
    sid = jnp.transpose(unet_forward(params['sketch_net_i'], sx_cm), (1, 0, 2, 3))
    sxf = jnp.transpose(unet_forward(params['sketch_net'], sx_cm), (1, 0, 2, 3))

    B, _, H, W = sxf.shape
    sx3 = jnp.broadcast_to(sxf, (B, 3, H, W))            # .expand(B, 3, H, W)
    # TODO(synk): train_transforms' random augmentations (RandomHorizontalFlip,
    # Pad, RandomCrop) are stochastic and omitted; Resize is identity here.
    # ((x+1)/2*255)/255 -> (x+1)/2, then (v-mean)/std, fused to one FMA (XLA tail).
    scale = (0.5 / PIXEL_STD).reshape(1, 3, 1, 1)
    shift = ((0.5 - PIXEL_MEAN) / PIXEL_STD).reshape(1, 3, 1, 1)
    sx_n = sx3 * scale + shift
    x_cat = jnp.concatenate([x, sx_n], axis=0)           # torch.cat((x, sx), 0)

    # TODO(synk): self.base is an external TransReID ViT factory backbone not
    # defined in this module; its outputs (global_feat, reconloss) are taken as
    # inputs rather than computed here.
    del x_cat  # would be consumed by self.base

    feat = batchnorm1d_train(global_feat, params['bn_w'], params['bn_b'])
    cls_score = linear_no_bias(feat, params['cls_w'])    # Linear(in_planes, C, bias=False)
    recon = sxf - sid                                    # tiny residual: plain XLA
    return cls_score, global_feat, recon, reconloss


# ----------------------------------------------------------------------------
if __name__ == "__main__":
    key = jax.random.PRNGKey(0)
    k_ni, k_n, k_cls, k_sx, k_x, k_gf = jax.random.split(key, 6)

    # Small demo config (same forward structure; the real model uses
    # num_downs=8, ngf=64, 256x256 inputs and in_planes=768).
    B = 2
    H = W = 64
    num_downs = 6          # U-Net bottlenecks a 64x64 input down to 1x1
    ngf = 8
    num_classes = 16
    in_planes = 64

    params = dict(
        sketch_net_i=build_unet_params(k_ni, input_nc=3, output_nc=1,
                                       num_downs=num_downs, ngf=ngf),
        sketch_net=build_unet_params(k_n, input_nc=3, output_nc=1,
                                     num_downs=num_downs, ngf=ngf),
        cls_w=jax.random.normal(k_cls, (num_classes, in_planes), F32) * 0.001,
        bn_w=jnp.ones((1, in_planes), F32),     # weights_init_kaiming: gamma=1
        bn_b=jnp.zeros((1, in_planes), F32),    # beta=0 (requires_grad=False)
    )

    sx = jax.random.normal(k_sx, (B, 3, H, W), F32)       # sketch-domain input
    x = jax.random.normal(k_x, (B, 3, H, W), F32)         # photo-domain input
    global_feat = jax.random.normal(k_gf, (2 * B, in_planes), F32)  # stand-in for self.base output
    reconloss = jnp.float32(0.0)

    outs = build_transformer_forward(params, sx, x, global_feat, reconloss)
    jax.block_until_ready(outs)
    assert outs[0].shape == (2 * B, num_classes)
    assert outs[1].shape == (2 * B, in_planes)
    assert outs[2].shape == (B, 1, H, W)
    print("KERNEL_OK")
</pallas_src>

<mosaic_0001>
module attributes {stable_mosaic.version = 11 : i64} {
  func.func @_bmm_kernel_bf16out(%arg0: i32, %arg1: i32, %arg2: i32, %arg3: i32, %arg4: memref<1x16x128xbf16, #tpu.memory_space<vmem>>, %arg5: memref<1x128x1024xbf16, #tpu.memory_space<vmem>>, %arg6: memref<16x1xf32, #tpu.memory_space<vmem>>, %arg7: memref<1x16x1024xbf16, #tpu.memory_space<vmem>>, %arg8: memref<16x1024xf32, #tpu.memory_space<vmem>>) attributes {dimension_semantics = [#tpu.dimension_semantics<parallel>, #tpu.dimension_semantics<parallel>, #tpu.dimension_semantics<parallel>, #tpu.dimension_semantics<arbitrary>], iteration_bounds = array<i64: 1, 1, 2, 1>, scalar_prefetch = 0 : i64, scratch_operands = 1 : i64, tpu.core_type = #tpu.core_type<tc>, window_params = [{transform_indices = @transform_0, window_bounds = array<i64: 1, 16, 128>}, {transform_indices = @transform_1, window_bounds = array<i64: 1, 128, 1024>}, {transform_indices = @transform_2, window_bounds = array<i64: 16, 1>}, {transform_indices = @transform_3, window_bounds = array<i64: 1, 16, 1024>}]} {
    %c0_i32 = arith.constant 0 : i32
    %0 = arith.cmpi eq, %arg3, %c0_i32 : i32
    %1 = arith.extui %0 : i1 to i32
    %c0_i32_0 = arith.constant 0 : i32
    %2 = arith.cmpi ne, %1, %c0_i32_0 : i32
    scf.if %2 {
      %c0_12 = arith.constant 0 : index
      %c0_13 = arith.constant 0 : index
      %14 = vector.load %arg6[%c0_12, %c0_13] : memref<16x1xf32, #tpu.memory_space<vmem>>, vector<16x1xf32>
      %15 = vector.shape_cast %14 : vector<16x1xf32> to vector<16x1xf32>
      %16 = vector.broadcast %15 : vector<16x1xf32> to vector<16x1024xf32>
      %c0_14 = arith.constant 0 : index
      %c0_15 = arith.constant 0 : index
      %17 = vector.load %arg8[%c0_14, %c0_15] : memref<16x1024xf32, #tpu.memory_space<vmem>>, vector<16x1024xf32>
      tpu.vector_store %arg8[%c0_14, %c0_15], %16 {strides = array<i32>} : memref<16x1024xf32, #tpu.memory_space<vmem>>, vector<16x1024xf32>,
    } else {
    }
    %c0 = arith.constant 0 : index
    %c0_1 = arith.constant 0 : index
    %c0_2 = arith.constant 0 : index
    %3 = vector.load %arg5[%c0, %c0_1, %c0_2] : memref<1x128x1024xbf16, #tpu.memory_space<vmem>>, vector<1x128x1024xbf16>
    %4 = vector.shape_cast %3 : vector<1x128x1024xbf16> to vector<128x1024xbf16>
    %c0_3 = arith.constant 0 : index
    %c0_4 = arith.constant 0 : index
    %5 = vector.load %arg8[%c0_3, %c0_4] : memref<16x1024xf32, #tpu.memory_space<vmem>>, vector<16x1024xf32>
    %c0_5 = arith.constant 0 : index
    %c0_6 = arith.constant 0 : index
    %c0_7 = arith.constant 0 : index
    %6 = vector.load %arg4[%c0_5, %c0_6, %c0_7] : memref<1x16x128xbf16, #tpu.memory_space<vmem>>, vector<1x16x128xbf16>
    %7 = vector.shape_cast %6 : vector<1x16x128xbf16> to vector<16x128xbf16>
    %cst = arith.constant dense<0.000000e+00> : vector<16x1024xf32>
    %8 = tpu.matmul %7, %4, %cst {dimension_numbers = #tpu.dot_dimension_numbers<[1], [0], [0], [1], [0, 0, 1, 1], [], []>} : vector<16x128xbf16>, vector<128x1024xbf16>, vector<16x1024xf32> -> vector<16x1024xf32>
    %9 = arith.addf %5, %8 : vector<16x1024xf32>
    %c0_8 = arith.constant 0 : index
    %c0_9 = arith.constant 0 : index
    %10 = vector.load %arg8[%c0_8, %c0_9] : memref<16x1024xf32, #tpu.memory_space<vmem>>, vector<16x1024xf32>
    tpu.vector_store %arg8[%c0_8, %c0_9], %9 {strides = array<i32>} : memref<16x1024xf32, #tpu.memory_space<vmem>>, vector<16x1024xf32>,
    %c0_i32_10 = arith.constant 0 : i32
    %11 = arith.cmpi eq, %arg3, %c0_i32_10 : i32
    %12 = arith.extui %11 : i1 to i32
    %c0_i32_11 = arith.constant 0 : i32
    %13 = arith.cmpi ne, %12, %c0_i32_11 : i32
    scf.if %13 {
      %c0_12 = arith.constant 0 : index
      %c0_13 = arith.constant 0 : index
      %14 = vector.load %arg8[%c0_12, %c0_13] : memref<16x1024xf32, #tpu.memory_space<vmem>>, vector<16x1024xf32>
      %15 = arith.truncf %14 : vector<16x1024xf32> to vector<16x1024xbf16>
      %c0_14 = arith.constant 0 : index
      %c0_15 = arith.constant 0 : index
      %c0_16 = arith.constant 0 : index
      %16 = vector.load %arg7[%c0_14, %c0_15, %c0_16] : memref<1x16x1024xbf16, #tpu.memory_space<vmem>>, vector<1x16x1024xbf16>
      %17 = vector.shape_cast %16 : vector<1x16x1024xbf16> to vector<16x1024xbf16>
      %18 = vector.shape_cast %15 : vector<16x1024xbf16> to vector<1x16x1024xbf16>
      tpu.vector_store %arg7[%c0_14, %c0_15, %c0_16], %18 {strides = array<i32>} : memref<1x16x1024xbf16, #tpu.memory_space<vmem>>, vector<1x16x1024xbf16>,
    } else {
    }
    return
  }
  func.func @transform_0(%arg0: i32, %arg1: i32, %arg2: i32, %arg3: i32) -> (i32, i32, i32) {
    %c0_i32 = arith.constant 0 : i32
    return %arg0, %arg1, %arg3 : i32, i32, i32
  }
  func.func @transform_1(%arg0: i32, %arg1: i32, %arg2: i32, %arg3: i32) -> (i32, i32, i32) {
    %c0_i32 = arith.constant 0 : i32
    return %arg0, %arg3, %arg2 : i32, i32, i32
  }
  func.func @transform_2(%arg0: i32, %arg1: i32, %arg2: i32, %arg3: i32) -> (i32, i32) {
    %c0_i32 = arith.constant 0 : i32
    %c0_i32_0 = arith.constant 0 : i32
    return %arg1, %c0_i32 : i32, i32
  }
  func.func @transform_3(%arg0: i32, %arg1: i32, %arg2: i32, %arg3: i32) -> (i32, i32, i32) {
    %c0_i32 = arith.constant 0 : i32
    return %arg0, %arg1, %arg2 : i32, i32, i32
  }
}

</mosaic_0001>

<llo_original>
// kernel: _pallas_bmm.1
$region0: #{_pallas_bmm.1}
  #allocation0 [shape = 'u32[]', space=smem, size = 0x4, offset = 0x4, fixed_abs, tag = 'smem constant byte address 0x4 - core index']
  #allocation1 [shape = 'u32[144,128]{1,0:T(1,128)}', space=vmem, size = 0x12000, scoped, tag = 'internal scratch']
  #allocation2 [shape = 'f32[16,1024]{1,0:T(8,128)}', space=vmem, size = 0x10000, scoped, tag = 'scratch operand']
  %s0 = inlined_call_operand.vmem [shape: bf16[1,16,128], index: 0, kind: input, shape index: {}]
  %s1 = inlined_call_operand.vmem [shape: bf16[1,128,2048], index: 1, kind: input, shape index: {}]
  %s2 = inlined_call_operand.vmem [shape: f32[16,1], index: 2, kind: input, shape index: {}]
  %s3 = inlined_call_operand.vmem [shape: bf16[1,16,2048], index: 3, kind: output, shape index: {}]
  %s4 = sld [smem:[#allocation0]]
  $region95: #{_pallas_bmm.1} parent=0
    _
  %s6 = ssub.s32 1, %s4
  %s7 = scalar_select 0, %s6, %s4
  $region1: #{_pallas_bmm.1} parent=0
    #allocation3 [shape = 'u8[524288]{0}', space=vmem, size = 0x80000, scoped, tag = 'input window, operand 1']
    #allocation4 [shape = 'u8[65536]{0}', space=vmem, size = 0x10000, scoped, tag = 'output window, operand 0']
    loop: start=0, step=1, limit=4
    $region2: #{_pallas_bmm.1} parent=1 // loop_pre_header
      _
    $region3: #{_pallas_bmm.1} parent=1 // loop_header
      %s9 = sphi 0, %s13
      %p10 = scmp.ge.s32.totalorder %s9, 4
      %s16 = sphi 0, %s42
      %s17 = sphi 0, %s38
      %s18 = sphi 0, %s34
      %s19 = sphi 0, %s30
      %s20 = sphi 0, %s16
      %s21 = sphi 0, %s17
      %s22 = sphi 0, %s18
      %s23 = sphi 0, %s19
      %s24 = sphi 0, %s20
      %s25 = sphi 0, %s21
      %s26 = sphi 0, %s22
      %s27 = sphi 0, %s23
      %s49 = sphi 0, %s51
      %s52 = sphi 0, %s49
      %s53 = sphi 0, %s52
      %s69 = sphi 0, %s53
      %s79 = sphi 0, %s81
      %s82 = sphi 0, %s79
      %s83 = sphi 0, %s82
      %s99 = sphi 0, %s83
      %s105 = sphi 0, %s107
      %s108 = sphi 0, %s105
      %s109 = sphi 0, %s108
      %s125 = sphi 0, %s109
      %s135 = sphi 0, %s137
      %s138 = sphi 0, %s135
      %s139 = sphi 0, %s138
      %s155 = sphi 0, %s139
    $region4: #{_pallas_bmm.1} parent=1 // loop_header_branch
      %12 = sbr.rel (%p10) target = $region8
    $region5: #{_pallas_bmm.1} parent=1 // loop_body
      %s14 = ssub.s32 %s9, 1
      %s15 = ssub.s32 %s9, 2
      %s28 = sadd.s32 1, %s19
      %p29 = scmp.ge.s32.totalorder %s28, 1
      %s30 = scalar_select %p29, 0, %s28
      %s31 = sadd.s32 1, %s18
      %s32 = scalar_select %p29, %s31, %s18
      %p33 = scmp.ge.s32.totalorder %s32, 2
      %s34 = scalar_select %p33, 0, %s32
      %s35 = sadd.s32 1, %s17
      %s36 = scalar_select %p33, %s35, %s17
      %p37 = scmp.ge.s32.totalorder %s36, 1
      %s38 = scalar_select %p37, 0, %s36
      %s39 = sadd.s32 1, %s16
      %s40 = scalar_select %p37, %s39, %s16
      %p41 = scmp.ge.s32.totalorder %s40, 1
      %s42 = scalar_select %p41, 0, %s40
      %s43 = ssub.s32 %s16, %s42
      %s44 = ssub.s32 %s17, %s38
      %s45 = sor.u32 %s43, %s44
      %s46 = ssub.s32 %s19, %s30
      %s47 = sor.u32 %s45, %s46
      %p48 = scmp.eq.s32.totalorder %s47, 0
      %s50 = sadd.s32 %s49, 1
      %s51 = scalar_select %p48, %s49, %s50
      %p54 = pneg %p48
      %p55 = scmp.eq.s32.totalorder %s9, 1
      %p56 = por %p54, %p55
      %p57 = scmp.ne.s32.totalorder %s49, %s52
      %p58 = scmp.eq.s32.totalorder %s9, 0
      %p59 = por %p57, %p58
      %p60 = scmp.ne.s32.totalorder %s49, %s52
      %p61 = scmp.eq.s32.totalorder %s14, 1
      %p62 = por %p60, %p61
      %p63 = scmp.ne.s32.totalorder %s52, %s53
      %p64 = scmp.eq.s32.totalorder %s14, 0
      %p65 = por %p63, %p64
      %p66 = scmp.ne.s32.totalorder %s52, %s53
      %p67 = scmp.eq.s32.totalorder %s15, 1
      %p68 = por %p66, %p67
      %p70 = scmp.ne.s32.totalorder %s53, %s69
      %p71 = scmp.eq.s32.totalorder %s15, 0
      %p72 = por %p70, %p71
      %s73 = ssub.s32 %s16, %s42
      %s74 = ssub.s32 %s19, %s30
      %s75 = sor.u32 %s73, %s74
      %s76 = ssub.s32 %s18, %s34
      %s77 = sor.u32 %s75, %s76
      %p78 = scmp.eq.s32.totalorder %s77, 0
      %s80 = sadd.s32 %s79, 1
      %s81 = scalar_select %p78, %s79, %s80
      %p84 = pneg %p78
      %p85 = scmp.eq.s32.totalorder %s9, 1
      %p86 = por %p84, %p85
      %p87 = scmp.ne.s32.totalorder %s79, %s82
      %p88 = scmp.eq.s32.totalorder %s9, 0
      %p89 = por %p87, %p88
      %p90 = scmp.ne.s32.totalorder %s79, %s82
      %p91 = scmp.eq.s32.totalorder %s14, 1
      %p92 = por %p90, %p91
      %p93 = scmp.ne.s32.totalorder %s82, %s83
      %p94 = scmp.eq.s32.totalorder %s14, 0
      %p95 = por %p93, %p94
      %p96 = scmp.ne.s32.totalorder %s82, %s83
      %p97 = scmp.eq.s32.totalorder %s15, 1
      %p98 = por %p96, %p97
      %p100 = scmp.ne.s32.totalorder %s83, %s99
      %p101 = scmp.eq.s32.totalorder %s15, 0
      %p102 = por %p100, %p101
      %s103 = ssub.s32 %s17, %s38
      %p104 = scmp.eq.s32.totalorder %s103, 0
      %s106 = sadd.s32 %s105, 1
      %s107 = scalar_select %p104, %s105, %s106
      %p110 = pneg %p104
      %p111 = scmp.eq.s32.totalorder %s9, 1
      %p112 = por %p110, %p111
      %p113 = scmp.ne.s32.totalorder %s105, %s108
      %p114 = scmp.eq.s32.totalorder %s9, 0
      %p115 = por %p113, %p114
      %p116 = scmp.ne.s32.totalorder %s105, %s108
      %p117 = scmp.eq.s32.totalorder %s14, 1
      %p118 = por %p116, %p117
      %p119 = scmp.ne.s32.totalorder %s108, %s109
      %p120 = scmp.eq.s32.totalorder %s14, 0
      %p121 = por %p119, %p120
      %p122 = scmp.ne.s32.totalorder %s108, %s109
      %p123 = scmp.eq.s32.totalorder %s15, 1
      %p124 = por %p122, %p123
      %p126 = scmp.ne.s32.totalorder %s109, %s125
      %p127 = scmp.eq.s32.totalorder %s15, 0
      %p128 = por %p126, %p127
      %s129 = ssub.s32 %s16, %s42
      %s130 = ssub.s32 %s17, %s38
      %s131 = sor.u32 %s129, %s130
      %s132 = ssub.s32 %s18, %s34
      %s133 = sor.u32 %s131, %s132
      %p134 = scmp.eq.s32.totalorder %s133, 0
      %s136 = sadd.s32 %s135, 1
      %s137 = scalar_select %p134, %s135, %s136
      %p140 = pneg %p134
      %p141 = scmp.eq.s32.totalorder %s9, 1
      %p142 = por %p140, %p141
      %p143 = scmp.ne.s32.totalorder %s135, %s138
      %p144 = scmp.eq.s32.totalorder %s9, 0
      %p145 = por %p143, %p144
      %p146 = scmp.ne.s32.totalorder %s135, %s138
      %p147 = scmp.eq.s32.totalorder %s14, 1
      %p148 = por %p146, %p147
      %p149 = scmp.ne.s32.totalorder %s138, %s139
      %p150 = scmp.eq.s32.totalorder %s14, 0
      %p151 = por %p149, %p150
      %p152 = scmp.ne.s32.totalorder %s138, %s139
      %p153 = scmp.eq.s32.totalorder %s15, 1
      %p154 = por %p152, %p153
      %p156 = scmp.ne.s32.totalorder %s139, %s155
      %p157 = scmp.eq.s32.totalorder %s15, 0
      %p158 = por %p156, %p157
      %p159 = scmp.le.s32.totalorder 1, %s9
      %p160 = scmp.lt.s32.totalorder %s9, 3
      %p161 = pnand %p159, %p160
      %p162 = pneg %p161
      // Predicated region
      $region9: #{_pallas_bmm.1} parent=5 // pred_check
        _
      $region10: #{_pallas_bmm.1} parent=5 // pred_check_branch
        %164 = sbr.rel (%p161) target = $region12
      $region11: #{_pallas_bmm.1} parent=5 // pred_region
        %s165 = ssub.s32 %s9, 1
        // Predicated region
        $region13: #{_pallas_bmm.1} parent=11 // pred_check
          %p166 = pneg %p65
        $region14: #{_pallas_bmm.1} parent=11 // pred_check_branch
          %168 = sbr.rel (%p166) target = $region16
        $region15: #{_pallas_bmm.1} parent=11 // pred_region
          %s169 = smul.u32 2, %s21
          %p170 = scmp.lt.s32.totalorder %s20, 0
          %s171 = scalar_select %p170, %s20, 0
          %p172 = scmp.lt.s32.totalorder %s169, 1
          %s173 = scalar_select %p172, %s169, 1
          %p174 = scmp.lt.s32.totalorder %s23, 0
          %s175 = scalar_select %p174, %s23, 0
          %s176 = sadd.s32 %s175, %s173
          %s177 = smul.addr %s171, 2
          %s178 = sadd.s32 %s176, %s177
          %s179 = smul.addr %s178, 4
          %s180 = scalar_lea.vmem %s0, %s179
          %s181 = smul.u32 2, %s21
        $region16: #{_pallas_bmm.1} parent=11 // pred_fallthru
          _
        // Predicated region
        $region17: #{_pallas_bmm.1} parent=11 // pred_check
          %p182 = pneg %p121
        $region18: #{_pallas_bmm.1} parent=11 // pred_check_branch
          %184 = sbr.rel (%p182) target = $region20
        $region19: #{_pallas_bmm.1} parent=11 // pred_region
          %s185 = smul.u32 2, %s21
          %p186 = scmp.lt.s32.totalorder %s185, 1
          %s187 = scalar_select %p186, %s185, 1
          %s188 = smul.addr %s187, 8
          %s189 = scalar_lea.vmem %s2, %s188
          %s190 = smul.u32 2, %s21
        $region20: #{_pallas_bmm.1} parent=11 // pred_fallthru
          _
      $region12: #{_pallas_bmm.1} parent=5 // pred_fallthru
        _
      %p191 = scmp.lt.s32.totalorder %s9, 2
      // Predicated region
      $region21: #{_pallas_bmm.1} parent=5 // pred_check
        %p192 = pneg %p191
      $region22: #{_pallas_bmm.1} parent=5 // pred_check_branch
        %194 = sbr.rel (%p192) target = $region24
      $region23: #{_pallas_bmm.1} parent=5 // pred_region
        // Predicated region
        $region25: #{_pallas_bmm.1} parent=23 // pred_check
          %p195 = pneg %p89
        $region26: #{_pallas_bmm.1} parent=23 // pred_check_branch
          %197 = sbr.rel (%p195) target = $region28
        $region27: #{_pallas_bmm.1} parent=23 // pred_region
          %s198 = sand.u32 %s79, 1
          %s199 = sand.u32 %s79, 1
          %s200 = smul.addr %s199, 512
          %s201 = scalar_lea.vmem [#allocation3], %s200
          %s202 = smul.u32 16, %s19
          %s203 = smul.u32 8, %s18
          %s204 = smul.addr %s202, 16
          %s205 = sadd.s32 %s203, %s204
          %s206 = smul.addr %s16, 256
          %s207 = sadd.s32 %s205, %s206
          %s208 = smul.addr %s207, 4
          %s209 = scalar_lea.vmem %s1, %s208
          // Predicated region
          $region29: #{_pallas_bmm.1} parent=27 // pred_check
            _
          $region30: #{_pallas_bmm.1} parent=27 // pred_check_branch
            %211 = sbr.rel (0) target = $region32
          $region31: #{_pallas_bmm.1} parent=27 // pred_region
            // Predicated region
            $region33: #{_pallas_bmm.1} parent=31 // pred_check
              _
            $region34: #{_pallas_bmm.1} parent=31 // pred_check_branch
              %213 = sbr.rel (0) target = $region36
            $region35: #{_pallas_bmm.1} parent=31 // pred_region
              loop: start=0, step=1, limit=1
              $region37: #{_pallas_bmm.1} parent=35 // loop_pre_header
                _
              $region38: #{_pallas_bmm.1} parent=35 // loop_header
                %s215 = sphi 0, %s219
                %p216 = scmp.ge.s32.totalorder %s215, 1
                %s220 = sphi %s209, %s209
                %s221 = sphi %s201, %s201
              $region39: #{_pallas_bmm.1} parent=35 // loop_header_branch
                %218 = sbr.rel (%p216) target = $region43
              $region40: #{_pallas_bmm.1} parent=35 // loop_body
                %v222 = vld [vmem:[%s220] sm:$0xff]
                %223 = vst [vmem:[%s221] sm:$0xff] %v222
                %v224 = vld [vmem:[%s220 + $0x8] sm:$0xff]
                %225 = vst [vmem:[%s221 + $0x8] sm:$0xff] %v224
                %v226 = vld [vmem:[%s220 + $0x10] sm:$0xff]
                %227 = vst [vmem:[%s221 + $0x10] sm:$0xff] %v226
                %v228 = vld [vmem:[%s220 + $0x18] sm:$0xff]
                %229 = vst [vmem:[%s221 + $0x18] sm:$0xff] %v228
                %v230 = vld [vmem:[%s220 + $0x40] sm:$0xff]
                %231 = vst [vmem:[%s221 + $0x20] sm:$0xff] %v230
                %v232 = vld [vmem:[%s220 + $0x48] sm:$0xff]
                %233 = vst [vmem:[%s221 + $0x28] sm:$0xff] %v232
                %v234 = vld [vmem:[%s220 + $0x50] sm:$0xff]
                %235 = vst [vmem:[%s221 + $0x30] sm:$0xff] %v234
                %v236 = vld [vmem:[%s220 + $0x58] sm:$0xff]
                %237 = vst [vmem:[%s221 + $0x38] sm:$0xff] %v236
                %v238 = vld [vmem:[%s220 + $0x80] sm:$0xff]
                %239 = vst [vmem:[%s221 + $0x40] sm:$0xff] %v238
                %v240 = vld [vmem:[%s220 + $0x88] sm:$0xff]
                %241 = vst [vmem:[%s221 + $0x48] sm:$0xff] %v240
                %v242 = vld [vmem:[%s220 + $0x90] sm:$0xff]
                %243 = vst [vmem:[%s221 + $0x50] sm:$0xff] %v242
                %v244 = vld [vmem:[%s220 + $0x98] sm:$0xff]
                %245 = vst [vmem:[%s221 + $0x58] sm:$0xff] %v244
                %v246 = vld [vmem:[%s220 + $0xc0] sm:$0xff]
                %247 = vst [vmem:[%s221 + $0x60] sm:$0xff] %v246
                %v248 = vld [vmem:[%s220 + $0xc8] sm:$0xff]
                %249 = vst [vmem:[%s221 + $0x68] sm:$0xff] %v248
                %v250 = vld [vmem:[%s220 + $0xd0] sm:$0xff]
                %251 = vst [vmem:[%s221 + $0x70] sm:$0xff] %v250
                %v252 = vld [vmem:[%s220 + $0xd8] sm:$0xff]
                %253 = vst [vmem:[%s221 + $0x78] sm:$0xff] %v252
                %v254 = vld [vmem:[%s220 + $0x100] sm:$0xff]
                %255 = vst [vmem:[%s221 + $0x80] sm:$0xff] %v254
                %v256 = vld [vmem:[%s220 + $0x108] sm:$0xff]
                %257 = vst [vmem:[%s221 + $0x88] sm:$0xff] %v256
                %v258 = vld [vmem:[%s220 + $0x110] sm:$0xff]
                %259 = vst [vmem:[%s221 + $0x90] sm:$0xff] %v258
                %v260 = vld [vmem:[%s220 + $0x118] sm:$0xff]
                %261 = vst [vmem:[%s221 + $0x98] sm:$0xff] %v260
                %v262 = vld [vmem:[%s220 + $0x140] sm:$0xff]
                %263 = vst [vmem:[%s221 + $0xa0] sm:$0xff] %v262
                %v264 = vld [vmem:[%s220 + $0x148] sm:$0xff]
                %265 = vst [vmem:[%s221 + $0xa8] sm:$0xff] %v264
                %v266 = vld [vmem:[%s220 + $0x150] sm:$0xff]
                %267 = vst [vmem:[%s221 + $0xb0] sm:$0xff] %v266
                %v268 = vld [vmem:[%s220 + $0x158] sm:$0xff]
                %269 = vst [vmem:[%s221 + $0xb8] sm:$0xff] %v268
                %v270 = vld [vmem:[%s220 + $0x180] sm:$0xff]
                %271 = vst [vmem:[%s221 + $0xc0] sm:$0xff] %v270
                %v272 = vld [vmem:[%s220 + $0x188] sm:$0xff]
                %273 = vst [vmem:[%s221 + $0xc8] sm:$0xff] %v272
                %v274 = vld [vmem:[%s220 + $0x190] sm:$0xff]
                %275 = vst [vmem:[%s221 + $0xd0] sm:$0xff] %v274
                %v276 = vld [vmem:[%s220 + $0x198] sm:$0xff]
                %277 = vst [vmem:[%s221 + $0xd8] sm:$0xff] %v276
                %v278 = vld [vmem:[%s220 + $0x1c0] sm:$0xff]
                %279 = vst [vmem:[%s221 + $0xe0] sm:$0xff] %v278
                %v280 = vld [vmem:[%s220 + $0x1c8] sm:$0xff]
                %281 = vst [vmem:[%s221 + $0xe8] sm:$0xff] %v280
                %v282 = vld [vmem:[%s220 + $0x1d0] sm:$0xff]
                %283 = vst [vmem:[%s221 + $0xf0] sm:$0xff] %v282
                %v284 = vld [vmem:[%s220 + $0x1d8] sm:$0xff]
                %285 = vst [vmem:[%s221 + $0xf8] sm:$0xff] %v284
                %v286 = vld [vmem:[%s220 + $0x200] sm:$0xff]
                %287 = vst [vmem:[%s221 + $0x100] sm:$0xff] %v286
                %v288 = vld [vmem:[%s220 + $0x208] sm:$0xff]
                %289 = vst [vmem:[%s221 + $0x108] sm:$0xff] %v288
                %v290 = vld [vmem:[%s220 + $0x210] sm:$0xff]
                %291 = vst [vmem:[%s221 + $0x110] sm:$0xff] %v290
                %v292 = vld [vmem:[%s220 + $0x218] sm:$0xff]
                %293 = vst [vmem:[%s221 + $0x118] sm:$0xff] %v292
                %v294 = vld [vmem:[%s220 + $0x240] sm:$0xff]
                %295 = vst [vmem:[%s221 + $0x120] sm:$0xff] %v294
                %v296 = vld [vmem:[%s220 + $0x248] sm:$0xff]
                %297 = vst [vmem:[%s221 + $0x128] sm:$0xff] %v296
                %v298 = vld [vmem:[%s220 + $0x250] sm:$0xff]
                %299 = vst [vmem:[%s221 + $0x130] sm:$0xff] %v298
                %v300 = vld [vmem:[%s220 + $0x258] sm:$0xff]
                %301 = vst [vmem:[%s221 + $0x138] sm:$0xff] %v300
                %v302 = vld [vmem:[%s220 + $0x280] sm:$0xff]
                %303 = vst [vmem:[%s221 + $0x140] sm:$0xff] %v302
                %v304 = vld [vmem:[%s220 + $0x288] sm:$0xff]
                %305 = vst [vmem:[%s221 + $0x148] sm:$0xff] %v304
                %v306 = vld [vmem:[%s220 + $0x290] sm:$0xff]
                %307 = vst [vmem:[%s221 + $0x150] sm:$0xff] %v306
                %v308 = vld [vmem:[%s220 + $0x298] sm:$0xff]
                %309 = vst [vmem:[%s221 + $0x158] sm:$0xff] %v308
                %v310 = vld [vmem:[%s220 + $0x2c0] sm:$0xff]
                %311 = vst [vmem:[%s221 + $0x160] sm:$0xff] %v310
                %v312 = vld [vmem:[%s220 + $0x2c8] sm:$0xff]
                %313 = vst [vmem:[%s221 + $0x168] sm:$0xff] %v312
                %v314 = vld [vmem:[%s220 + $0x2d0] sm:$0xff]
                %315 = vst [vmem:[%s221 + $0x170] sm:$0xff] %v314
                %v316 = vld [vmem:[%s220 + $0x2d8] sm:$0xff]
                %317 = vst [vmem:[%s221 + $0x178] sm:$0xff] %v316
                %v318 = vld [vmem:[%s220 + $0x300] sm:$0xff]
                %319 = vst [vmem:[%s221 + $0x180] sm:$0xff] %v318
                %v320 = vld [vmem:[%s220 + $0x308] sm:$0xff]
                %321 = vst [vmem:[%s221 + $0x188] sm:$0xff] %v320
                %v322 = vld [vmem:[%s220 + $0x310] sm:$0xff]
                %323 = vst [vmem:[%s221 + $0x190] sm:$0xff] %v322
                %v324 = vld [vmem:[%s220 + $0x318] sm:$0xff]
                %325 = vst [vmem:[%s221 + $0x198] sm:$0xff] %v324
                %v326 = vld [vmem:[%s220 + $0x340] sm:$0xff]
                %327 = vst [vmem:[%s221 + $0x1a0] sm:$0xff] %v326
                %v328 = vld [vmem:[%s220 + $0x348] sm:$0xff]
                %329 = vst [vmem:[%s221 + $0x1a8] sm:$0xff] %v328
                %v330 = vld [vmem:[%s220 + $0x350] sm:$0xff]
                %331 = vst [vmem:[%s221 + $0x1b0] sm:$0xff] %v330
                %v332 = vld [vmem:[%s220 + $0x358] sm:$0xff]
                %333 = vst [vmem:[%s221 + $0x1b8] sm:$0xff] %v332
                %v334 = vld [vmem:[%s220 + $0x380] sm:$0xff]
                %335 = vst [vmem:[%s221 + $0x1c0] sm:$0xff] %v334
                %v336 = vld [vmem:[%s220 + $0x388] sm:$0xff]
                %337 = vst [vmem:[%s221 + $0x1c8] sm:$0xff] %v336
                %v338 = vld [vmem:[%s220 + $0x390] sm:$0xff]
                %339 = vst [vmem:[%s221 + $0x1d0] sm:$0xff] %v338
                %v340 = vld [vmem:[%s220 + $0x398] sm:$0xff]
                %341 = vst [vmem:[%s221 + $0x1d8] sm:$0xff] %v340
                %v342 = vld [vmem:[%s220 + $0x3c0] sm:$0xff]
                %343 = vst [vmem:[%s221 + $0x1e0] sm:$0xff] %v342
                %v344 = vld [vmem:[%s220 + $0x3c8] sm:$0xff]
                %345 = vst [vmem:[%s221 + $0x1e8] sm:$0xff] %v344
                %v346 = vld [vmem:[%s220 + $0x3d0] sm:$0xff]
                %347 = vst [vmem:[%s221 + $0x1f0] sm:$0xff] %v346
                %v348 = vld [vmem:[%s220 + $0x3d8] sm:$0xff]
                %349 = vst [vmem:[%s221 + $0x1f8] sm:$0xff] %v348
              $region41: #{_pallas_bmm.1} parent=35 // loop_footer
                %s219 = sadd.s32 1, %s215
              $region42: #{_pallas_bmm.1} parent=35 // loop_footer_branch
                %214 = sbr.rel target = $region38
              $region43: #{_pallas_bmm.1} parent=35 // loop_exit
                _
            $region36: #{_pallas_bmm.1} parent=31 // pred_fallthru
              _
            // Predicated region
            $region44: #{_pallas_bmm.1} parent=31 // pred_check
              _
            $region45: #{_pallas_bmm.1} parent=31 // pred_check_branch
              %351 = sbr.rel target = $region47
            $region46: #{_pallas_bmm.1} parent=31 // pred_region
              _
            $region47: #{_pallas_bmm.1} parent=31 // pred_fallthru
              _
          $region32: #{_pallas_bmm.1} parent=27 // pred_fallthru
            _
          %352 = vnop
        $region28: #{_pallas_bmm.1} parent=23 // pred_fallthru
          _
      $region24: #{_pallas_bmm.1} parent=5 // pred_fallthru
        _
      %p353 = scmp.le.s32.totalorder 1, %s9
      %p354 = scmp.lt.s32.totalorder %s9, 3
      %p355 = pnand %p353, %p354
      %p356 = pneg %p355
      // Predicated region
      $region48: #{_pallas_bmm.1} parent=5 // pred_check
        _
      $region49: #{_pallas_bmm.1} parent=5 // pred_check_branch
        %358 = sbr.rel (%p355) target = $region51
      $region50: #{_pallas_bmm.1} parent=5 // pred_region
        %s359 = ssub.s32 %s9, 1
        %s360 = sand.u32 %s82, 1
        %s361 = sand.u32 %s82, 1
        %s362 = smul.addr %s361, 512
        %s363 = scalar_lea.vmem [#allocation3], %s362
        // Predicated region
        $region52: #{_pallas_bmm.1} parent=50 // pred_check
          %p364 = pneg %p95
        $region53: #{_pallas_bmm.1} parent=50 // pred_check_branch
          %366 = sbr.rel (%p364) target = $region55
        $region54: #{_pallas_bmm.1} parent=50 // pred_region
          _
        $region55: #{_pallas_bmm.1} parent=50 // pred_fallthru
          _
        %s367 = smul.u32 2, %s21
        %p368 = scmp.lt.s32.totalorder %s20, 0
        %s369 = scalar_select %p368, %s20, 0
        %p370 = scmp.lt.s32.totalorder %s367, 1
        %s371 = scalar_select %p370, %s367, 1
        %p372 = scmp.lt.s32.totalorder %s23, 0
        %s373 = scalar_select %p372, %s23, 0
        %s374 = sadd.s32 %s373, %s371
        %s375 = smul.addr %s369, 2
        %s376 = sadd.s32 %s374, %s375
        %s377 = smul.addr %s376, 4
        %s378 = scalar_lea.vmem %s0, %s377
        %p379 = pneg %p65
        %p380 = pneg %p62
        %s381 = sand.u32 %s82, 1
        %s382 = sand.u32 %s82, 1
        %s383 = smul.addr %s382, 512
        %s384 = scalar_lea.vmem [#allocation3], %s383
        %p385 = pneg %p95
        %p386 = pneg %p92
        %s387 = smul.u32 2, %s21
        %p388 = scmp.lt.s32.totalorder %s387, 1
        %s389 = scalar_select %p388, %s387, 1
        %s390 = smul.addr %s389, 8
        %s391 = scalar_lea.vmem %s2, %s390
        %p392 = pneg %p121
        %p393 = pneg %p118
        %p394 = pneg %p151
        %p395 = pneg %p148
        %s396 = sand.u32 %s138, 1
        %s397 = sand.u32 %s138, 1
        %s398 = smul.addr %s397, 64
        %s399 = scalar_lea.vmem [#allocation4], %s398
        %s400 = smul.u32 2, %s21
        %p401 = scmp.lt.s32.totalorder %s20, 0
        %s402 = scalar_select %p401, %s20, 0
        %p403 = scmp.lt.s32.totalorder %s400, 1
        %s404 = scalar_select %p403, %s400, 1
        %p405 = scmp.lt.s32.totalorder %s23, 0
        %s406 = scalar_select %p405, %s23, 0
        %s407 = sadd.s32 %s406, %s404
        %s408 = smul.addr %s402, 2
        %s409 = sadd.s32 %s407, %s408
        %s410 = smul.addr %s409, 4
        %s411 = scalar_lea.vmem %s0, %s410
        %s412 = smul.u32 2, %s21
        %s413 = smul.u32 16, %s23
        %s414 = smul.u32 8, %s22
        %s415 = smul.u32 2, %s21
        %p416 = scmp.lt.s32.totalorder %s415, 1
        %s417 = scalar_select %p416, %s415, 1
        %s418 = smul.addr %s417, 8
        %s419 = scalar_lea.vmem %s2, %s418
        %s420 = smul.u32 2, %s21
        %s421 = smul.u32 2, %s21
        %s422 = smul.u32 8, %s22
        %p424 = scmp.eq.s32.totalorder %s23, 0
        // Predicated region
        $region56: #{_pallas_bmm.1} parent=50 // pred_check
          %p425 = pneg %p424
        $region57: #{_pallas_bmm.1} parent=50 // pred_check_branch
          %427 = sbr.rel (%p425) target = $region59
        $region58: #{_pallas_bmm.1} parent=50 // pred_region
          %v428 = vld [vmem:[%s419] sm:$0xff]
          %v429 = vld [vmem:[%s419 + $0x8] sm:$0xff]
          %431 = vset.pattern.permute.xlu0 0
          %432 = vperm.xlu0 %431, %v428
          %v433 = vpop.permute.xlu0 %432
          %436 = vset.pattern.permute.xlu0 0
          %437 = vperm.xlu0 %436, %v429
          %v438 = vpop.permute.xlu0 %437
          %440 = vst [vmem:[#allocation2] sm:$0xff] %v433
          %441 = vst [vmem:[#allocation2 + $0x8] sm:$0xff] %v433
          %442 = vst [vmem:[#allocation2 + $0x10] sm:$0xff] %v433
          %443 = vst [vmem:[#allocation2 + $0x18] sm:$0xff] %v433
          %444 = vst [vmem:[#allocation2 + $0x20] sm:$0xff] %v433
          %445 = vst [vmem:[#allocation2 + $0x28] sm:$0xff] %v433
          %446 = vst [vmem:[#allocation2 + $0x30] sm:$0xff] %v433
          %447 = vst [vmem:[#allocation2 + $0x38] sm:$0xff] %v433
          %448 = vst [vmem:[#allocation2 + $0x40] sm:$0xff] %v438
          %449 = vst [vmem:[#allocation2 + $0x48] sm:$0xff] %v438
          %450 = vst [vmem:[#allocation2 + $0x50] sm:$0xff] %v438
          %451 = vst [vmem:[#allocation2 + $0x58] sm:$0xff] %v438
          %452 = vst [vmem:[#allocation2 + $0x60] sm:$0xff] %v438
          %453 = vst [vmem:[#allocation2 + $0x68] sm:$0xff] %v438
          %454 = vst [vmem:[#allocation2 + $0x70] sm:$0xff] %v438
          %455 = vst [vmem:[#allocation2 + $0x78] sm:$0xff] %v438
        $region59: #{_pallas_bmm.1} parent=50 // pred_fallthru
          _
        %v456 = vld [vmem:[%s363] sm:$0xff]
        %v457 = vld [vmem:[%s363 + $0x8] sm:$0xff]
        %v458 = vld [vmem:[%s363 + $0x10] sm:$0xff]
        %v459 = vld [vmem:[%s363 + $0x18] sm:$0xff]
        %v460 = vld [vmem:[%s363 + $0x20] sm:$0xff]
        %v461 = vld [vmem:[%s363 + $0x28] sm:$0xff]
        %v462 = vld [vmem:[%s363 + $0x30] sm:$0xff]
        %v463 = vld [vmem:[%s363 + $0x38] sm:$0xff]
        %v464 = vld [vmem:[%s363 + $0x40] sm:$0xff]
        %v465 = vld [vmem:[%s363 + $0x48] sm:$0xff]
        %v466 = vld [vmem:[%s363 + $0x50] sm:$0xff]
        %v467 = vld [vmem:[%s363 + $0x58] sm:$0xff]
        %v468 = vld [vmem:[%s363 + $0x60] sm:$0xff]
        %v469 = vld [vmem:[%s363 + $0x68] sm:$0xff]
        %v470 = vld [vmem:[%s363 + $0x70] sm:$0xff]
        %v471 = vld [vmem:[%s363 + $0x78] sm:$0xff]
        %v472 = vld [vmem:[%s363 + $0x80] sm:$0xff]
        %v473 = vld [vmem:[%s363 + $0x88] sm:$0xff]
        %v474 = vld [vmem:[%s363 + $0x90] sm:$0xff]
        %v475 = vld [vmem:[%s363 + $0x98] sm:$0xff]
        %v476 = vld [vmem:[%s363 + $0xa0] sm:$0xff]
        %v477 = vld [vmem:[%s363 + $0xa8] sm:$0xff]
        %v478 = vld [vmem:[%s363 + $0xb0] sm:$0xff]
        %v479 = vld [vmem:[%s363 + $0xb8] sm:$0xff]
        %v480 = vld [vmem:[%s363 + $0xc0] sm:$0xff]
        %v481 = vld [vmem:[%s363 + $0xc8] sm:$0xff]
        %v482 = vld [vmem:[%s363 + $0xd0] sm:$0xff]
        %v483 = vld [vmem:[%s363 + $0xd8] sm:$0xff]
        %v484 = vld [vmem:[%s363 + $0xe0] sm:$0xff]
        %v485 = vld [vmem:[%s363 + $0xe8] sm:$0xff]
        %v486 = vld [vmem:[%s363 + $0xf0] sm:$0xff]
        %v487 = vld [vmem:[%s363 + $0xf8] sm:$0xff]
        %v488 = vld [vmem:[%s363 + $0x100] sm:$0xff]
        %v489 = vld [vmem:[%s363 + $0x108] sm:$0xff]
        %v490 = vld [vmem:[%s363 + $0x110] sm:$0xff]
        %v491 = vld [vmem:[%s363 + $0x118] sm:$0xff]
        %v492 = vld [vmem:[%s363 + $0x120] sm:$0xff]
        %v493 = vld [vmem:[%s363 + $0x128] sm:$0xff]
        %v494 = vld [vmem:[%s363 + $0x130] sm:$0xff]
        %v495 = vld [vmem:[%s363 + $0x138] sm:$0xff]
        %v496 = vld [vmem:[%s363 + $0x140] sm:$0xff]
        %v497 = vld [vmem:[%s363 + $0x148] sm:$0xff]
        %v498 = vld [vmem:[%s363 + $0x150] sm:$0xff]
        %v499 = vld [vmem:[%s363 + $0x158] sm:$0xff]
        %v500 = vld [vmem:[%s363 + $0x160] sm:$0xff]
        %v501 = vld [vmem:[%s363 + $0x168] sm:$0xff]
        %v502 = vld [vmem:[%s363 + $0x170] sm:$0xff]
        %v503 = vld [vmem:[%s363 + $0x178] sm:$0xff]
        %v504 = vld [vmem:[%s363 + $0x180] sm:$0xff]
        %v505 = vld [vmem:[%s363 + $0x188] sm:$0xff]
        %v506 = vld [vmem:[%s363 + $0x190] sm:$0xff]
        %v507 = vld [vmem:[%s363 + $0x198] sm:$0xff]
        %v508 = vld [vmem:[%s363 + $0x1a0] sm:$0xff]
        %v509 = vld [vmem:[%s363 + $0x1a8] sm:$0xff]
        %v510 = vld [vmem:[%s363 + $0x1b0] sm:$0xff]
        %v511 = vld [vmem:[%s363 + $0x1b8] sm:$0xff]
        %v512 = vld [vmem:[%s363 + $0x1c0] sm:$0xff]
        %v513 = vld [vmem:[%s363 + $0x1c8] sm:$0xff]
        %v514 = vld [vmem:[%s363 + $0x1d0] sm:$0xff]
        %v515 = vld [vmem:[%s363 + $0x1d8] sm:$0xff]
        %v516 = vld [vmem:[%s363 + $0x1e0] sm:$0xff]
        %v517 = vld [vmem:[%s363 + $0x1e8] sm:$0xff]
        %v518 = vld [vmem:[%s363 + $0x1f0] sm:$0xff]
        %v519 = vld [vmem:[%s363 + $0x1f8] sm:$0xff]
        %v520 = vld [vmem:[#allocation2] sm:$0xff]
        %v521 = vld [vmem:[#allocation2 + $0x8] sm:$0xff]
        %v522 = vld [vmem:[#allocation2 + $0x10] sm:$0xff]
        %v523 = vld [vmem:[#allocation2 + $0x18] sm:$0xff]
        %v524 = vld [vmem:[#allocation2 + $0x20] sm:$0xff]
        %v525 = vld [vmem:[#allocation2 + $0x28] sm:$0xff]
        %v526 = vld [vmem:[#allocation2 + $0x30] sm:$0xff]
        %v527 = vld [vmem:[#allocation2 + $0x38] sm:$0xff]
        %v528 = vld [vmem:[#allocation2 + $0x40] sm:$0xff]
        %v529 = vld [vmem:[#allocation2 + $0x48] sm:$0xff]
        %v530 = vld [vmem:[#allocation2 + $0x50] sm:$0xff]
        %v531 = vld [vmem:[#allocation2 + $0x58] sm:$0xff]
        %v532 = vld [vmem:[#allocation2 + $0x60] sm:$0xff]
        %v533 = vld [vmem:[#allocation2 + $0x68] sm:$0xff]
        %v534 = vld [vmem:[#allocation2 + $0x70] sm:$0xff]
        %v535 = vld [vmem:[#allocation2 + $0x78] sm:$0xff]
        %v536 = vld [vmem:[%s411] sm:$0xf]
        %v537 = vld [vmem:[%s411 + $0x4] sm:$0xf]
        %v540 = vunpack.c.l.b16 %v536
        %v541 = vunpack.c.l.b16 %v537
        %v542 = vpack.c.b16 %v541, %v540
        %v608 = vunpack.c.l.b16 %v456
        %v609 = vunpack.c.h.b16 %v456
        %v610 = vunpack.c.l.b16 %v457
        %v611 = vunpack.c.h.b16 %v457
        %v612 = vunpack.c.l.b16 %v458
        %v613 = vunpack.c.h.b16 %v458
        %v614 = vunpack.c.l.b16 %v459
        %v615 = vunpack.c.h.b16 %v459
        %v616 = vunpack.c.l.b16 %v460
        %v617 = vunpack.c.h.b16 %v460
        %v618 = vunpack.c.l.b16 %v461
        %v619 = vunpack.c.h.b16 %v461
        %v620 = vunpack.c.l.b16 %v462
        %v621 = vunpack.c.h.b16 %v462
        %v622 = vunpack.c.l.b16 %v463
        %v623 = vunpack.c.h.b16 %v463
        %v624 = vunpack.c.l.b16 %v464
        %v625 = vunpack.c.h.b16 %v464
        %v626 = vunpack.c.l.b16 %v465
        %v627 = vunpack.c.h.b16 %v465
        %v628 = vunpack.c.l.b16 %v466
        %v629 = vunpack.c.h.b16 %v466
        %v630 = vunpack.c.l.b16 %v467
        %v631 = vunpack.c.h.b16 %v467
        %v632 = vunpack.c.l.b16 %v468
        %v633 = vunpack.c.h.b16 %v468
        %v634 = vunpack.c.l.b16 %v469
        %v635 = vunpack.c.h.b16 %v469
        %v636 = vunpack.c.l.b16 %v470
        %v637 = vunpack.c.h.b16 %v470
        %v638 = vunpack.c.l.b16 %v471
        %v639 = vunpack.c.h.b16 %v471
        %v640 = vunpack.c.l.b16 %v472
        %v641 = vunpack.c.h.b16 %v472
        %v642 = vunpack.c.l.b16 %v473
        %v643 = vunpack.c.h.b16 %v473
        %v644 = vunpack.c.l.b16 %v474
        %v645 = vunpack.c.h.b16 %v474
        %v646 = vunpack.c.l.b16 %v475
        %v647 = vunpack.c.h.b16 %v475
        %v648 = vunpack.c.l.b16 %v476
        %v649 = vunpack.c.h.b16 %v476
        %v650 = vunpack.c.l.b16 %v477
        %v651 = vunpack.c.h.b16 %v477
        %v652 = vunpack.c.l.b16 %v478
        %v653 = vunpack.c.h.b16 %v478
        %v654 = vunpack.c.l.b16 %v479
        %v655 = vunpack.c.h.b16 %v479
        %v656 = vunpack.c.l.b16 %v480
        %v657 = vunpack.c.h.b16 %v480
        %v658 = vunpack.c.l.b16 %v481
        %v659 = vunpack.c.h.b16 %v481
        %v660 = vunpack.c.l.b16 %v482
        %v661 = vunpack.c.h.b16 %v482
        %v662 = vunpack.c.l.b16 %v483
        %v663 = vunpack.c.h.b16 %v483
        %v664 = vunpack.c.l.b16 %v484
        %v665 = vunpack.c.h.b16 %v484
        %v666 = vunpack.c.l.b16 %v485
        %v667 = vunpack.c.h.b16 %v485
        %v668 = vunpack.c.l.b16 %v486
        %v669 = vunpack.c.h.b16 %v486
        %v670 = vunpack.c.l.b16 %v487
        %v671 = vunpack.c.h.b16 %v487
        %v672 = vunpack.c.l.b16 %v488
        %v673 = vunpack.c.h.b16 %v488
        %v674 = vunpack.c.l.b16 %v489
        %v675 = vunpack.c.h.b16 %v489
        %v676 = vunpack.c.l.b16 %v490
        %v677 = vunpack.c.h.b16 %v490
        %v678 = vunpack.c.l.b16 %v491
        %v679 = vunpack.c.h.b16 %v491
        %v680 = vunpack.c.l.b16 %v492
        %v681 = vunpack.c.h.b16 %v492
        %v682 = vunpack.c.l.b16 %v493
        %v683 = vunpack.c.h.b16 %v493
        %v684 = vunpack.c.l.b16 %v494
        %v685 = vunpack.c.h.b16 %v494
        %v686 = vunpack.c.l.b16 %v495
        %v687 = vunpack.c.h.b16 %v495
        %v688 = vunpack.c.l.b16 %v496
        %v689 = vunpack.c.h.b16 %v496
        %v690 = vunpack.c.l.b16 %v497
        %v691 = vunpack.c.h.b16 %v497
        %v692 = vunpack.c.l.b16 %v498
        %v693 = vunpack.c.h.b16 %v498
        %v694 = vunpack.c.l.b16 %v499
        %v695 = vunpack.c.h.b16 %v499
        %v696 = vunpack.c.l.b16 %v500
        %v697 = vunpack.c.h.b16 %v500
        %v698 = vunpack.c.l.b16 %v501
        %v699 = vunpack.c.h.b16 %v501
        %v700 = vunpack.c.l.b16 %v502
        %v701 = vunpack.c.h.b16 %v502
        %v702 = vunpack.c.l.b16 %v503
        %v703 = vunpack.c.h.b16 %v503
        %v704 = vunpack.c.l.b16 %v504
        %v705 = vunpack.c.h.b16 %v504
        %v706 = vunpack.c.l.b16 %v505
        %v707 = vunpack.c.h.b16 %v505
        %v708 = vunpack.c.l.b16 %v506
        %v709 = vunpack.c.h.b16 %v506
        %v710 = vunpack.c.l.b16 %v507
        %v711 = vunpack.c.h.b16 %v507
        %v712 = vunpack.c.l.b16 %v508
        %v713 = vunpack.c.h.b16 %v508
        %v714 = vunpack.c.l.b16 %v509
        %v715 = vunpack.c.h.b16 %v509
        %v716 = vunpack.c.l.b16 %v510
        %v717 = vunpack.c.h.b16 %v510
        %v718 = vunpack.c.l.b16 %v511
        %v719 = vunpack.c.h.b16 %v511
        %v720 = vunpack.c.l.b16 %v512
        %v721 = vunpack.c.h.b16 %v512
        %v722 = vunpack.c.l.b16 %v513
        %v723 = vunpack.c.h.b16 %v513
        %v724 = vunpack.c.l.b16 %v514
        %v725 = vunpack.c.h.b16 %v514
        %v726 = vunpack.c.l.b16 %v515
        %v727 = vunpack.c.h.b16 %v515
        %v728 = vunpack.c.l.b16 %v516
        %v729 = vunpack.c.h.b16 %v516
        %v730 = vunpack.c.l.b16 %v517
        %v731 = vunpack.c.h.b16 %v517
        %v732 = vunpack.c.l.b16 %v518
        %v733 = vunpack.c.h.b16 %v518
        %v734 = vunpack.c.l.b16 %v519
        %v735 = vunpack.c.h.b16 %v519
        %v736 = vpack.c.b16 %v616, %v608
        %v737 = vpack.c.b16 %v617, %v609
        %v738 = vpack.c.b16 %v618, %v610
        %v739 = vpack.c.b16 %v619, %v611
        %v740 = vpack.c.b16 %v620, %v612
        %v741 = vpack.c.b16 %v621, %v613
        %v742 = vpack.c.b16 %v622, %v614
        %v743 = vpack.c.b16 %v623, %v615
        %v744 = vpack.c.b16 %v632, %v624
        %v745 = vpack.c.b16 %v633, %v625
        %v746 = vpack.c.b16 %v634, %v626
        %v747 = vpack.c.b16 %v635, %v627
        %v748 = vpack.c.b16 %v636, %v628
        %v749 = vpack.c.b16 %v637, %v629
        %v750 = vpack.c.b16 %v638, %v630
        %v751 = vpack.c.b16 %v639, %v631
        %v752 = vpack.c.b16 %v648, %v640
        %v753 = vpack.c.b16 %v649, %v641
        %v754 = vpack.c.b16 %v650, %v642
        %v755 = vpack.c.b16 %v651, %v643
        %v756 = vpack.c.b16 %v652, %v644
        %v757 = vpack.c.b16 %v653, %v645
        %v758 = vpack.c.b16 %v654, %v646
        %v759 = vpack.c.b16 %v655, %v647
        %v760 = vpack.c.b16 %v664, %v656
        %v761 = vpack.c.b16 %v665, %v657
        %v762 = vpack.c.b16 %v666, %v658
        %v763 = vpack.c.b16 %v667, %v659
        %v764 = vpack.c.b16 %v668, %v660
        %v765 = vpack.c.b16 %v669, %v661
        %v766 = vpack.c.b16 %v670, %v662
        %v767 = vpack.c.b16 %v671, %v663
        %v768 = vpack.c.b16 %v680, %v672
        %v769 = vpack.c.b16 %v681, %v673
        %v770 = vpack.c.b16 %v682, %v674
        %v771 = vpack.c.b16 %v683, %v675
        %v772 = vpack.c.b16 %v684, %v676
        %v773 = vpack.c.b16 %v685, %v677
        %v774 = vpack.c.b16 %v686, %v678
        %v775 = vpack.c.b16 %v687, %v679
        %v776 = vpack.c.b16 %v696, %v688
        %v777 = vpack.c.b16 %v697, %v689
        %v778 = vpack.c.b16 %v698, %v690
        %v779 = vpack.c.b16 %v699, %v691
        %v780 = vpack.c.b16 %v700, %v692
        %v781 = vpack.c.b16 %v701, %v693
        %v782 = vpack.c.b16 %v702, %v694
        %v783 = vpack.c.b16 %v703, %v695
        %v784 = vpack.c.b16 %v712, %v704
        %v785 = vpack.c.b16 %v713, %v705
        %v786 = vpack.c.b16 %v714, %v706
        %v787 = vpack.c.b16 %v715, %v707
        %v788 = vpack.c.b16 %v716, %v708
        %v789 = vpack.c.b16 %v717, %v709
        %v790 = vpack.c.b16 %v718, %v710
        %v791 = vpack.c.b16 %v719, %v711
        %v792 = vpack.c.b16 %v728, %v720
        %v793 = vpack.c.b16 %v729, %v721
        %v794 = vpack.c.b16 %v730, %v722
        %v795 = vpack.c.b16 %v731, %v723
        %v796 = vpack.c.b16 %v732, %v724
        %v797 = vpack.c.b16 %v733, %v725
        %v798 = vpack.c.b16 %v734, %v726
        %v799 = vpack.c.b16 %v735, %v727
        %864 = vmatprep.subr.bf16.mxu0 %v737
        %865 = vmatpush1.bf16.msra.mxu0 %v736
        %866 = vmatprep.subr.bf16.mxu0 %v745
        %867 = vmatpush1.bf16.msra.mxu0 %v744
        %868 = vmatprep.subr.bf16.mxu0 %v753
        %869 = vmatpush1.bf16.msra.mxu0 %v752
        %870 = vmatprep.subr.bf16.mxu0 %v761
        %871 = vmatpush1.bf16.msra.mxu0 %v760
        %872 = vmatprep.subr.bf16.mxu0 %v769
        %873 = vmatpush1.bf16.msra.mxu0 %v768
        %874 = vmatprep.subr.bf16.mxu0 %v777
        %875 = vmatpush1.bf16.msra.mxu0 %v776
        %876 = vmatprep.subr.bf16.mxu0 %v785
        %877 = vmatpush1.bf16.msra.mxu0 %v784
        %878 = vmatprep.subr.bf16.mxu0 %v793
        %879 = vmatpush1.bf16.msra.mxu0 %v792
        %880 = vmatprep.subr.bf16.mxu0 0
        %881 = vmatpush1.bf16.msra.mxu0 0
        %882 = vmatprep.subr.bf16.mxu0 0
        %883 = vmatpush1.bf16.msra.mxu0 0
        %884 = vmatprep.subr.bf16.mxu0 0
        %885 = vmatpush1.bf16.msra.mxu0 0
        %886 = vmatprep.subr.bf16.mxu0 0
        %887 = vmatpush1.bf16.msra.mxu0 0
        %888 = vmatprep.subr.bf16.mxu0 0
        %889 = vmatpush1.bf16.msra.mxu0 0
        %890 = vmatprep.subr.bf16.mxu0 0
        %891 = vmatpush1.bf16.msra.mxu0 0
        %892 = vmatprep.subr.bf16.mxu0 0
        %893 = vmatpush1.bf16.msra.mxu0 0
        %894 = vmatprep.subr.bf16.mxu0 0
        %895 = vmatpush1.bf16.msra.mxu0 0
        %896 = vmatprep.mubr.bf16.mxu0 0
        %897 = vmatmul.mubr.bf16.gmra.mrb[0].mxu0 %v542
        %v898 = vpop.f32.mrb[0].mxu0
        %v899 = vadd.f32 0.0, %v898
        %v900 = vpop.f32.mrb[0].mxu0
        %v901 = vadd.f32 0.0, %v900
        %v902 = vpop.f32.mrb[0].mxu0
        %v903 = vadd.f32 0.0, %v902
        %v904 = vpop.f32.mrb[0].mxu0
        %v905 = vadd.f32 0.0, %v904
        %906 = vdwg.mxu0
        %907 = vmatprep.subr.bf16.mxu0 %v739
        %908 = vmatpush1.bf16.msra.mxu0 %v738
        %909 = vmatprep.subr.bf16.mxu0 %v747
        %910 = vmatpush1.bf16.msra.mxu0 %v746
        %911 = vmatprep.subr.bf16.mxu0 %v755
        %912 = vmatpush1.bf16.msra.mxu0 %v754
        %913 = vmatprep.subr.bf16.mxu0 %v763
        %914 = vmatpush1.bf16.msra.mxu0 %v762
        %915 = vmatprep.subr.bf16.mxu0 %v771
        %916 = vmatpush1.bf16.msra.mxu0 %v770
        %917 = vmatprep.subr.bf16.mxu0 %v779
        %918 = vmatpush1.bf16.msra.mxu0 %v778
        %919 = vmatprep.subr.bf16.mxu0 %v787
        %920 = vmatpush1.bf16.msra.mxu0 %v786
        %921 = vmatprep.subr.bf16.mxu0 %v795
        %922 = vmatpush1.bf16.msra.mxu0 %v794
        %923 = vmatprep.subr.bf16.mxu0 0
        %924 = vmatpush1.bf16.msra.mxu0 0
        %925 = vmatprep.subr.bf16.mxu0 0
        %926 = vmatpush1.bf16.msra.mxu0 0
        %927 = vmatprep.subr.bf16.mxu0 0
        %928 = vmatpush1.bf16.msra.mxu0 0
        %929 = vmatprep.subr.bf16.mxu0 0
        %930 = vmatpush1.bf16.msra.mxu0 0
        %931 = vmatprep.subr.bf16.mxu0 0
        %932 = vmatpush1.bf16.msra.mxu0 0
        %933 = vmatprep.subr.bf16.mxu0 0
        %934 = vmatpush1.bf16.msra.mxu0 0
        %935 = vmatprep.subr.bf16.mxu0 0
        %936 = vmatpush1.bf16.msra.mxu0 0
        %937 = vmatprep.subr.bf16.mxu0 0
        %938 = vmatpush1.bf16.msra.mxu0 0
        %939 = vmatprep.mubr.bf16.mxu0 0
        %940 = vmatmul.mubr.bf16.gmra.mrb[0].mxu0 %v542
        %v941 = vpop.f32.mrb[0].mxu0
        %v942 = vadd.f32 0.0, %v941
        %v943 = vpop.f32.mrb[0].mxu0
        %v944 = vadd.f32 0.0, %v943
        %v945 = vpop.f32.mrb[0].mxu0
        %v946 = vadd.f32 0.0, %v945
        %v947 = vpop.f32.mrb[0].mxu0
        %v948 = vadd.f32 0.0, %v947
        %949 = vdwg.mxu0
        %950 = vmatprep.subr.bf16.mxu0 %v741
        %951 = vmatpush1.bf16.msra.mxu0 %v740
        %952 = vmatprep.subr.bf16.mxu0 %v749
        %953 = vmatpush1.bf16.msra.mxu0 %v748
        %954 = vmatprep.subr.bf16.mxu0 %v757
        %955 = vmatpush1.bf16.msra.mxu0 %v756
        %956 = vmatprep.subr.bf16.mxu0 %v765
        %957 = vmatpush1.bf16.msra.mxu0 %v764
        %958 = vmatprep.subr.bf16.mxu0 %v773
        %959 = vmatpush1.bf16.msra.mxu0 %v772
        %960 = vmatprep.subr.bf16.mxu0 %v781
        %961 = vmatpush1.bf16.msra.mxu0 %v780
        %962 = vmatprep.subr.bf16.mxu0 %v789
        %963 = vmatpush1.bf16.msra.mxu0 %v788
        %964 = vmatprep.subr.bf16.mxu0 %v797
        %965 = vmatpush1.bf16.msra.mxu0 %v796
        %966 = vmatprep.subr.bf16.mxu0 0
        %967 = vmatpush1.bf16.msra.mxu0 0
        %968 = vmatprep.subr.bf16.mxu0 0
        %969 = vmatpush1.bf16.msra.mxu0 0
        %970 = vmatprep.subr.bf16.mxu0 0
        %971 = vmatpush1.bf16.msra.mxu0 0
        %972 = vmatprep.subr.bf16.mxu0 0
        %973 = vmatpush1.bf16.msra.mxu0 0
        %974 = vmatprep.subr.bf16.mxu0 0
        %975 = vmatpush1.bf16.msra.mxu0 0
        %976 = vmatprep.subr.bf16.mxu0 0
        %977 = vmatpush1.bf16.msra.mxu0 0
        %978 = vmatprep.subr.bf16.mxu0 0
        %979 = vmatpush1.bf16.msra.mxu0 0
        %980 = vmatprep.subr.bf16.mxu0 0
        %981 = vmatpush1.bf16.msra.mxu0 0
        %982 = vmatprep.mubr.bf16.mxu0 0
        %983 = vmatmul.mubr.bf16.gmra.mrb[0].mxu0 %v542
        %v984 = vpop.f32.mrb[0].mxu0
        %v985 = vadd.f32 0.0, %v984
        %v986 = vpop.f32.mrb[0].mxu0
        %v987 = vadd.f32 0.0, %v986
        %v988 = vpop.f32.mrb[0].mxu0
        %v989 = vadd.f32 0.0, %v988
        %v990 = vpop.f32.mrb[0].mxu0
        %v991 = vadd.f32 0.0, %v990
        %992 = vdwg.mxu0
        %993 = vmatprep.subr.bf16.mxu0 %v743
        %994 = vmatpush1.bf16.msra.mxu0 %v742
        %995 = vmatprep.subr.bf16.mxu0 %v751
        %996 = vmatpush1.bf16.msra.mxu0 %v750
        %997 = vmatprep.subr.bf16.mxu0 %v759
        %998 = vmatpush1.bf16.msra.mxu0 %v758
        %999 = vmatprep.subr.bf16.mxu0 %v767
        %1000 = vmatpush1.bf16.msra.mxu0 %v766
        %1001 = vmatprep.subr.bf16.mxu0 %v775
        %1002 = vmatpush1.bf16.msra.mxu0 %v774
        %1003 = vmatprep.subr.bf16.mxu0 %v783
        %1004 = vmatpush1.bf16.msra.mxu0 %v782
        %1005 = vmatprep.subr.bf16.mxu0 %v791
        %1006 = vmatpush1.bf16.msra.mxu0 %v790
        %1007 = vmatprep.subr.bf16.mxu0 %v799
        %1008 = vmatpush1.bf16.msra.mxu0 %v798
        %1009 = vmatprep.subr.bf16.mxu0 0
        %1010 = vmatpush1.bf16.msra.mxu0 0
        %1011 = vmatprep.subr.bf16.mxu0 0
        %1012 = vmatpush1.bf16.msra.mxu0 0
        %1013 = vmatprep.subr.bf16.mxu0 0
        %1014 = vmatpush1.bf16.msra.mxu0 0
        %1015 = vmatprep.subr.bf16.mxu0 0
        %1016 = vmatpush1.bf16.msra.mxu0 0
        %1017 = vmatprep.subr.bf16.mxu0 0
        %1018 = vmatpush1.bf16.msra.mxu0 0
        %1019 = vmatprep.subr.bf16.mxu0 0
        %1020 = vmatpush1.bf16.msra.mxu0 0
        %1021 = vmatprep.subr.bf16.mxu0 0
        %1022 = vmatpush1.bf16.msra.mxu0 0
        %1023 = vmatprep.subr.bf16.mxu0 0
        %1024 = vmatpush1.bf16.msra.mxu0 0
        %1025 = vmatprep.mubr.bf16.mxu0 0
        %1026 = vmatmul.mubr.bf16.gmra.mrb[0].mxu0 %v542
        %v1027 = vpop.f32.mrb[0].mxu0
        %v1028 = vadd.f32 0.0, %v1027
        %v1029 = vpop.f32.mrb[0].mxu0
        %v1030 = vadd.f32 0.0, %v1029
        %v1031 = vpop.f32.mrb[0].mxu0
        %v1032 = vadd.f32 0.0, %v1031
        %v1033 = vpop.f32.mrb[0].mxu0
        %v1034 = vadd.f32 0.0, %v1033
        %1035 = vdwg.mxu0
        %v1036 = vadd.f32 %v520, %v899
        %v1037 = vadd.f32 %v521, %v901
        %v1038 = vadd.f32 %v522, %v942
        %v1039 = vadd.f32 %v523, %v944
        %v1040 = vadd.f32 %v524, %v985
        %v1041 = vadd.f32 %v525, %v987
        %v1042 = vadd.f32 %v526, %v1028
        %v1043 = vadd.f32 %v527, %v1030
        %v1044 = vadd.f32 %v528, %v903
        %v1045 = vadd.f32 %v529, %v905
        %v1046 = vadd.f32 %v530, %v946
        %v1047 = vadd.f32 %v531, %v948
        %v1048 = vadd.f32 %v532, %v989
        %v1049 = vadd.f32 %v533, %v991
        %v1050 = vadd.f32 %v534, %v1032
        %v1051 = vadd.f32 %v535, %v1034
        %1052 = vst [vmem:[#allocation2] sm:$0xff] %v1036
        %1053 = vst [vmem:[#allocation2 + $0x8] sm:$0xff] %v1037
        %1054 = vst [vmem:[#allocation2 + $0x10] sm:$0xff] %v1038
        %1055 = vst [vmem:[#allocation2 + $0x18] sm:$0xff] %v1039
        %1056 = vst [vmem:[#allocation2 + $0x20] sm:$0xff] %v1040
        %1057 = vst [vmem:[#allocation2 + $0x28] sm:$0xff] %v1041
        %1058 = vst [vmem:[#allocation2 + $0x30] sm:$0xff] %v1042
        %1059 = vst [vmem:[#allocation2 + $0x38] sm:$0xff] %v1043
        %1060 = vst [vmem:[#allocation2 + $0x40] sm:$0xff] %v1044
        %1061 = vst [vmem:[#allocation2 + $0x48] sm:$0xff] %v1045
        %1062 = vst [vmem:[#allocation2 + $0x50] sm:$0xff] %v1046
        %1063 = vst [vmem:[#allocation2 + $0x58] sm:$0xff] %v1047
        %1064 = vst [vmem:[#allocation2 + $0x60] sm:$0xff] %v1048
        %1065 = vst [vmem:[#allocation2 + $0x68] sm:$0xff] %v1049
        %1066 = vst [vmem:[#allocation2 + $0x70] sm:$0xff] %v1050
        %1067 = vst [vmem:[#allocation2 + $0x78] sm:$0xff] %v1051
        // Predicated region
        $region60: #{_pallas_bmm.1} parent=50 // pred_check
          %p1068 = pneg %p424
        $region61: #{_pallas_bmm.1} parent=50 // pred_check_branch
          %1070 = sbr.rel (%p1068) target = $region63
        $region62: #{_pallas_bmm.1} parent=50 // pred_region
          %v1071 = vld [vmem:[#allocation2] sm:$0xff]
          %v1072 = vld [vmem:[#allocation2 + $0x8] sm:$0xff]
          %v1073 = vld [vmem:[#allocation2 + $0x10] sm:$0xff]
          %v1074 = vld [vmem:[#allocation2 + $0x18] sm:$0xff]
          %v1075 = vld [vmem:[#allocation2 + $0x20] sm:$0xff]
          %v1076 = vld [vmem:[#allocation2 + $0x28] sm:$0xff]
          %v1077 = vld [vmem:[#allocation2 + $0x30] sm:$0xff]
          %v1078 = vld [vmem:[#allocation2 + $0x38] sm:$0xff]
          %v1079 = vld [vmem:[#allocation2 + $0x40] sm:$0xff]
          %v1080 = vld [vmem:[#allocation2 + $0x48] sm:$0xff]
          %v1081 = vld [vmem:[#allocation2 + $0x50] sm:$0xff]
          %v1082 = vld [vmem:[#allocation2 + $0x58] sm:$0xff]
          %v1083 = vld [vmem:[#allocation2 + $0x60] sm:$0xff]
          %v1084 = vld [vmem:[#allocation2 + $0x68] sm:$0xff]
          %v1085 = vld [vmem:[#allocation2 + $0x70] sm:$0xff]
          %v1086 = vld [vmem:[#allocation2 + $0x78] sm:$0xff]
          %v1087 = vpack.c.bf16 %v1079, %v1071
          %v1088 = vpack.c.bf16 %v1080, %v1072
          %v1089 = vpack.c.bf16 %v1081, %v1073
          %v1090 = vpack.c.bf16 %v1082, %v1074
          %v1091 = vpack.c.bf16 %v1083, %v1075
          %v1092 = vpack.c.bf16 %v1084, %v1076
          %v1093 = vpack.c.bf16 %v1085, %v1077
          %v1094 = vpack.c.bf16 %v1086, %v1078
          %v1103 = vunpack.c.l.b16 %v1087
          %v1104 = vunpack.c.l.b16 %v1088
          %v1105 = vunpack.c.l.b16 %v1089
          %v1106 = vunpack.c.l.b16 %v1090
          %v1107 = vunpack.c.l.b16 %v1091
          %v1108 = vunpack.c.l.b16 %v1092
          %v1109 = vunpack.c.l.b16 %v1093
          %v1110 = vunpack.c.l.b16 %v1094
          %v1111 = vunpack.c.h.b16 %v1087
          %v1112 = vunpack.c.h.b16 %v1088
          %v1113 = vunpack.c.h.b16 %v1089
          %v1114 = vunpack.c.h.b16 %v1090
          %v1115 = vunpack.c.h.b16 %v1091
          %v1116 = vunpack.c.h.b16 %v1092
          %v1117 = vunpack.c.h.b16 %v1093
          %v1118 = vunpack.c.h.b16 %v1094
          %v1119 = vpack.c.b16 %v1104, %v1103
          %v1120 = vpack.c.b16 %v1106, %v1105
          %v1121 = vpack.c.b16 %v1108, %v1107
          %v1122 = vpack.c.b16 %v1110, %v1109
          %v1123 = vpack.c.b16 %v1112, %v1111
          %v1124 = vpack.c.b16 %v1114, %v1113
          %v1125 = vpack.c.b16 %v1116, %v1115
          %v1126 = vpack.c.b16 %v1118, %v1117
          %1135 = vst [vmem:[%s399] sm:$0xff] %v1119
          %1136 = vst [vmem:[%s399 + $0x8] sm:$0xff] %v1120
          %1137 = vst [vmem:[%s399 + $0x10] sm:$0xff] %v1121
          %1138 = vst [vmem:[%s399 + $0x18] sm:$0xff] %v1122
          %1139 = vst [vmem:[%s399 + $0x20] sm:$0xff] %v1123
          %1140 = vst [vmem:[%s399 + $0x28] sm:$0xff] %v1124
          %1141 = vst [vmem:[%s399 + $0x30] sm:$0xff] %v1125
          %1142 = vst [vmem:[%s399 + $0x38] sm:$0xff] %v1126
        $region63: #{_pallas_bmm.1} parent=50 // pred_fallthru
          _
        %s1143 = sand.u32 %s138, 1
        %s1144 = sand.u32 %s138, 1
        %s1145 = smul.addr %s1144, 64
        %s1146 = scalar_lea.vmem [#allocation4], %s1145
        // Predicated region
        $region64: #{_pallas_bmm.1} parent=50 // pred_check
          %p1147 = pneg %p148
        $region65: #{_pallas_bmm.1} parent=50 // pred_check_branch
          %1149 = sbr.rel (%p1147) target = $region67
        $region66: #{_pallas_bmm.1} parent=50 // pred_region
          %s1150 = smul.u32 2, %s21
          %s1151 = smul.u32 8, %s22
          %s1152 = smul.addr %s1150, 16
          %s1153 = sadd.s32 %s1151, %s1152
          %s1154 = smul.addr %s20, 32
          %s1155 = sadd.s32 %s1153, %s1154
          %s1156 = smul.addr %s1155, 4
          %s1157 = scalar_lea.vmem %s3, %s1156
          // Predicated region
          $region68: #{_pallas_bmm.1} parent=66 // pred_check
            _
          $region69: #{_pallas_bmm.1} parent=66 // pred_check_branch
            %1159 = sbr.rel (0) target = $region71
          $region70: #{_pallas_bmm.1} parent=66 // pred_region
            // Predicated region
            $region72: #{_pallas_bmm.1} parent=70 // pred_check
              _
            $region73: #{_pallas_bmm.1} parent=70 // pred_check_branch
              %1161 = sbr.rel (0) target = $region75
            $region74: #{_pallas_bmm.1} parent=70 // pred_region
              loop: start=0, step=1, limit=1
              $region76: #{_pallas_bmm.1} parent=74 // loop_pre_header
                _
              $region77: #{_pallas_bmm.1} parent=74 // loop_header
                %s1163 = sphi 0, %s1167
                %p1164 = scmp.ge.s32.totalorder %s1163, 1
                %s1168 = sphi %s1146, %s1146
                %s1169 = sphi %s1157, %s1157
              $region78: #{_pallas_bmm.1} parent=74 // loop_header_branch
                %1166 = sbr.rel (%p1164) target = $region82
              $region79: #{_pallas_bmm.1} parent=74 // loop_body
                %v1170 = vld [vmem:[%s1168] sm:$0xff]
                %1171 = vst [vmem:[%s1169] sm:$0xff] %v1170
                %v1172 = vld [vmem:[%s1168 + $0x8] sm:$0xff]
                %1173 = vst [vmem:[%s1169 + $0x8] sm:$0xff] %v1172
                %v1174 = vld [vmem:[%s1168 + $0x10] sm:$0xff]
                %1175 = vst [vmem:[%s1169 + $0x10] sm:$0xff] %v1174
                %v1176 = vld [vmem:[%s1168 + $0x18] sm:$0xff]
                %1177 = vst [vmem:[%s1169 + $0x18] sm:$0xff] %v1176
                %v1178 = vld [vmem:[%s1168 + $0x20] sm:$0xff]
                %1179 = vst [vmem:[%s1169 + $0x40] sm:$0xff] %v1178
                %v1180 = vld [vmem:[%s1168 + $0x28] sm:$0xff]
                %1181 = vst [vmem:[%s1169 + $0x48] sm:$0xff] %v1180
                %v1182 = vld [vmem:[%s1168 + $0x30] sm:$0xff]
                %1183 = vst [vmem:[%s1169 + $0x50] sm:$0xff] %v1182
                %v1184 = vld [vmem:[%s1168 + $0x38] sm:$0xff]
                %1185 = vst [vmem:[%s1169 + $0x58] sm:$0xff] %v1184
              $region80: #{_pallas_bmm.1} parent=74 // loop_footer
                %s1167 = sadd.s32 1, %s1163
              $region81: #{_pallas_bmm.1} parent=74 // loop_footer_branch
                %1162 = sbr.rel target = $region77
              $region82: #{_pallas_bmm.1} parent=74 // loop_exit
                _
            $region75: #{_pallas_bmm.1} parent=70 // pred_fallthru
              _
            // Predicated region
            $region83: #{_pallas_bmm.1} parent=70 // pred_check
              _
            $region84: #{_pallas_bmm.1} parent=70 // pred_check_branch
              %1187 = sbr.rel target = $region86
            $region85: #{_pallas_bmm.1} parent=70 // pred_region
              _
            $region86: #{_pallas_bmm.1} parent=70 // pred_fallthru
              _
          $region71: #{_pallas_bmm.1} parent=66 // pred_fallthru
            _
          %1188 = vnop
        $region67: #{_pallas_bmm.1} parent=50 // pred_fallthru
          _
      $region51: #{_pallas_bmm.1} parent=5 // pred_fallthru
        _
      %p1189 = scmp.le.s32.totalorder 2, %s9
      // Predicated region
      $region87: #{_pallas_bmm.1} parent=5 // pred_check
        %p1190 = pneg %p1189
      $region88: #{_pallas_bmm.1} parent=5 // pred_check_branch
        %1192 = sbr.rel (%p1190) target = $region90
      $region89: #{_pallas_bmm.1} parent=5 // pred_region
        %s1193 = ssub.s32 %s9, 2
        // Predicated region
        $region91: #{_pallas_bmm.1} parent=89 // pred_check
          %p1194 = pneg %p154
        $region92: #{_pallas_bmm.1} parent=89 // pred_check_branch
          %1196 = sbr.rel (%p1194) target = $region94
        $region93: #{_pallas_bmm.1} parent=89 // pred_region
          %s1197 = sand.u32 %s139, 1
          %s1198 = sand.u32 %s139, 1
          %s1199 = smul.addr %s1198, 64
          %s1200 = scalar_lea.vmem [#allocation4], %s1199
        $region94: #{_pallas_bmm.1} parent=89 // pred_fallthru
          _
      $region90: #{_pallas_bmm.1} parent=5 // pred_fallthru
        _
    $region6: #{_pallas_bmm.1} parent=1 // loop_footer
      %s13 = sadd.s32 1, %s9
    $region7: #{_pallas_bmm.1} parent=1 // loop_footer_branch
      %8 = sbr.rel target = $region3
    $region8: #{_pallas_bmm.1} parent=1 // loop_exit
      _

</llo_original>
